<compile_context>
chip_gen: v5e
topology: v5e:2x2
jax: 0.10.0
libtpu: 0.0.40
codegen_flags: <defaults>
</compile_context>

<pallas_src>
import math

import jax
import jax.numpy as jnp
from jax.experimental import pallas as pl
from jax.experimental.pallas import tpu as pltpu

# ----- small synthetic sizes consistent with the module -----
B = 2        # batch (number of prompts)
N = 8        # sequence length
D = 32       # transformer width
H = 4        # attention heads
HD = D // H  # head dim
MLP = 4 * D  # CLIP MLP hidden
P = 32       # text projection dim
L = 3        # transformer layers
N_CTX = 2    # compound (deep) prompt length
N_DEEP = 2   # number of deeper compound prompts (replaced at layers 1..N_DEEP)
EPS = 1e-5
NEG_INF = -1e30


def _layer_norm(x, g, b):
    # single pass: mean and mean-of-squares (independent reductions), var = E[x^2]-mu^2
    mu = jnp.mean(x, axis=-1, keepdims=True)
    ms = jnp.mean(x * x, axis=-1, keepdims=True)
    var = ms - mu * mu
    return (x - mu) * jax.lax.rsqrt(var + EPS) * g + b


# ---------------------------------------------------------------------------
# Pallas kernel: one grid step == one transformer layer (weights streamed).
# ---------------------------------------------------------------------------
def text_encoder_kernel(
        eot_ref,                                    # SMEM scalar prefetch (B,)
        prompts_ref, pos_ref, cp_ref,
        ln1g_ref, ln1b_ref, wqkv_ref, bqkv_ref, wo_ref, bo_ref,
        ln2g_ref, ln2b_ref, w1_ref, b1_ref, w2_ref, b2_ref,
        lnfg_ref, lnfb_ref, proj_ref,
        out_ref,
        x_ref):                                     # VMEM scratch (B*N, D) f32
    f32 = jnp.float32
    bf16 = jnp.bfloat16
    li = pl.program_id(0)

    # ---- init residual stream at the first layer ----
    @pl.when(li == 0)
    def _():
        x_ref[...] = (prompts_ref[...] + pos_ref[...]).reshape(B * N, D)

    # ---- MaPLe compound-prompt token replacement (layers 1..N_DEEP) ----
    @pl.when(jnp.logical_and(li >= 1, li <= N_DEEP))
    def _():
        cp_l = cp_ref[0]                                    # (N_CTX, D)
        row = jax.lax.broadcasted_iota(jnp.int32, (B * N, 1), 0)
        pos_in_seq = row % N
        xv = x_ref[...]
        for j in range(N_CTX):                              # static unroll (N_CTX=2)
            xv = jnp.where(pos_in_seq == 1 + j, cp_l[j:j + 1, :], xv)
        x_ref[...] = xv

    x = x_ref[...]                                          # (B*N, D) f32

    # causal mask (CLIP build_attention_mask)
    rr = jax.lax.broadcasted_iota(jnp.int32, (N, N), 0)
    cc = jax.lax.broadcasted_iota(jnp.int32, (N, N), 1)
    mask = jnp.where(cc > rr, NEG_INF, 0.0).astype(f32)     # (N, N)

    # ---- multi-head causal self-attention ----
    xn = _layer_norm(x, ln1g_ref[0], ln1b_ref[0])           # f32
    # fused in_proj: one lane-dense (B*N,D)@(D,3D) matmul; softmax scale is
    # already folded into the q columns host-side.
    qkv = (jnp.dot(xn.astype(bf16), wqkv_ref[0],
                   preferred_element_type=f32) + bqkv_ref[0])   # (B*N, 3D) f32

    def split_heads(z):
        # (B*N, D) head-major columns -> (H*B, N, HD); only tile-aligned
        # sublane reshapes + leading-axis concat (no lane<->sublane transpose).
        parts = [z[:, h * HD:(h + 1) * HD].reshape(B, N, HD) for h in range(H)]
        return jnp.concatenate(parts, axis=0)

    q = split_heads(qkv[:, 0:D]).astype(bf16)
    k = split_heads(qkv[:, D:2 * D]).astype(bf16)
    v = split_heads(qkv[:, 2 * D:3 * D]).astype(bf16)

    # scores / values batched over all H*B heads in a single einsum pair
    s = jnp.einsum("gqe,gke->gqk", q, k, preferred_element_type=f32)
    s = s + mask[None]
    s = s - jnp.max(s, axis=-1, keepdims=True)
    e = jnp.exp(s)                                           # f32 softmax
    p = e * pl.reciprocal(jnp.sum(e, axis=-1, keepdims=True), approx=True)
    o = jnp.einsum("gqk,gke->gqe", p.astype(bf16), v,
                   preferred_element_type=f32)               # (H*B, N, HD)

    # concat heads -> (B*N, D) and apply ONE output projection (D, D)
    o_cat = jnp.concatenate(
        [o[h * B:(h + 1) * B].reshape(B * N, HD) for h in range(H)], axis=-1)
    attn = (jnp.dot(o_cat.astype(bf16), wo_ref[0],
                    preferred_element_type=f32) + bo_ref[0])
    x = x + attn

    # ---- MLP with QuickGELU ----
    xn2 = _layer_norm(x, ln2g_ref[0], ln2b_ref[0])
    h1 = (jnp.dot(xn2.astype(bf16), w1_ref[0],
                  preferred_element_type=f32) + b1_ref[0])
    h1 = h1 * jax.nn.sigmoid(1.702 * h1)                     # f32
    x = x + (jnp.dot(h1.astype(bf16), w2_ref[0],
                     preferred_element_type=f32) + b2_ref[0])
    x_ref[...] = x

    # ---- ln_final + EOT-token gather + text projection (last layer only) ----
    @pl.when(li == pl.num_programs(0) - 1)
    def _():
        xf = _layer_norm(x_ref[...], lnfg_ref[...], lnfb_ref[...])   # (B*N, D)
        # TODO(synk): at hundreds of prompts replace the one-hot gather with an
        # index-driven dynamic-slice gather (O(B*D) instead of O(B^2*N*D)).
        r_iota = jax.lax.broadcasted_iota(jnp.int32, (B, B * N), 1)
        b_iota = jax.lax.broadcasted_iota(jnp.int32, (B, B * N), 0)
        target = jnp.zeros((B, B * N), jnp.int32)
        for b in range(B):                                   # static unroll (B=2)
            target = jnp.where(b_iota == b, eot_ref[b] + b * N, target)
        onehot = (r_iota == target).astype(jnp.float32)
        rows = jnp.dot(onehot, xf, preferred_element_type=jnp.float32)  # exact gather
        out_ref[...] = jnp.dot(rows.astype(bf16), proj_ref[...],
                               preferred_element_type=jnp.float32)      # (B, P)


# ---------------------------------------------------------------------------
# Wrapper: grid over layers, per-layer weights streamed, eot via scalar prefetch
# ---------------------------------------------------------------------------
def text_encoder_forward(prompts, tokenized_prompts, compound_prompts, params):
    p = params
    eot = jnp.argmax(tokenized_prompts, axis=-1).astype(jnp.int32)
    cp = jnp.stack(compound_prompts, axis=0)                 # (N_DEEP, N_CTX, D)

    # one-time host-side parameter transforms:
    #  * fold 1/sqrt(HD) softmax scale into the fused in_proj's q columns,
    #  * cast matmul weights to bf16 (biases / LN params stay f32).
    scale = 1.0 / math.sqrt(HD)
    qscale = jnp.concatenate([jnp.full((D,), scale, jnp.float32),
                              jnp.ones((2 * D,), jnp.float32)])
    wqkv = (p["wqkv"] * qscale[None, None, :]).astype(jnp.bfloat16)
    bqkv = p["bqkv"] * qscale[None, None, :]
    wo = p["wo"].astype(jnp.bfloat16)
    w1 = p["w1"].astype(jnp.bfloat16)
    w2 = p["w2"].astype(jnp.bfloat16)
    proj = p["proj"].astype(jnp.bfloat16)

    inputs = [prompts, p["pos_emb"], cp,
              p["ln1_g"], p["ln1_b"], wqkv, bqkv, wo, p["bo"],
              p["ln2_g"], p["ln2_b"], w1, p["b1"], w2, p["b2"],
              p["lnf_g"], p["lnf_b"], proj]

    def const_spec(a):
        return pl.BlockSpec(a.shape, lambda li, eot_ref, nd=a.ndim: (0,) * nd)

    def layer_spec(a):       # leading axis = layer; stream one layer per grid step
        return pl.BlockSpec((1,) + a.shape[1:],
                            lambda li, eot_ref, nd=a.ndim: (li,) + (0,) * (nd - 1))

    cp_spec = pl.BlockSpec((1, N_CTX, D),
                           lambda li, eot_ref: (jnp.clip(li - 1, 0, N_DEEP - 1), 0, 0))

    in_specs = [
        const_spec(prompts), const_spec(p["pos_emb"]), cp_spec,
        layer_spec(p["ln1_g"]), layer_spec(p["ln1_b"]),
        layer_spec(wqkv), layer_spec(bqkv), layer_spec(wo), layer_spec(p["bo"]),
        layer_spec(p["ln2_g"]), layer_spec(p["ln2_b"]),
        layer_spec(w1), layer_spec(p["b1"]), layer_spec(w2), layer_spec(p["b2"]),
        const_spec(p["lnf_g"]), const_spec(p["lnf_b"]), const_spec(proj),
    ]

    grid_spec = pltpu.PrefetchScalarGridSpec(
        num_scalar_prefetch=1,
        grid=(L,),
        in_specs=in_specs,
        out_specs=pl.BlockSpec((B, P), lambda li, eot_ref: (0, 0)),
        scratch_shapes=[pltpu.VMEM((B * N, D), jnp.float32)],
    )
    return pl.pallas_call(
        text_encoder_kernel,
        grid_spec=grid_spec,
        out_shape=jax.ShapeDtypeStruct((B, P), jnp.float32),
        compiler_params=pltpu.CompilerParams(
            dimension_semantics=("arbitrary",)),   # residual carried across layers
    )(eot, *inputs)


# ---------------------------------------------------------------------------
# Pure-JAX reference (f32 highest precision) for validation
# ---------------------------------------------------------------------------
def reference_forward(prompts, tokenized_prompts, compound_prompts, params):
    p = params
    with jax.default_matmul_precision("highest"):
        x = prompts + p["pos_emb"][None]
        row = jnp.arange(N)[:, None]
        col = jnp.arange(N)[None, :]
        mask = jnp.where(col > row, NEG_INF, 0.0).astype(jnp.float32)
        counter = 0
        for li in range(L):
            if li > 0 and counter < len(compound_prompts):
                cpb = jnp.broadcast_to(compound_prompts[counter][None],
                                       (B, N_CTX, D))
                x = jnp.concatenate([x[:, :1], cpb, x[:, 1 + N_CTX:]], axis=1)
                counter += 1
            xn = _layer_norm(x, p["ln1_g"][li], p["ln1_b"][li])
            qkv = xn @ p["wqkv"][li] + p["bqkv"][li]
            q, k, v = jnp.split(qkv, 3, axis=-1)

            def to_heads(z):
                return z.reshape(B, N, H, HD).transpose(0, 2, 1, 3)

            q, k, v = to_heads(q), to_heads(k), to_heads(v)
            s = jnp.einsum("bhqe,bhke->bhqk", q, k) / math.sqrt(HD) + mask
            pr = jax.nn.softmax(s, axis=-1)
            o = jnp.einsum("bhqk,bhke->bhqe", pr, v)
            o = o.transpose(0, 2, 1, 3).reshape(B, N, D)
            x = x + o @ p["wo"][li] + p["bo"][li]
            xn2 = _layer_norm(x, p["ln2_g"][li], p["ln2_b"][li])
            h1 = xn2 @ p["w1"][li] + p["b1"][li]
            h1 = h1 * jax.nn.sigmoid(1.702 * h1)
            x = x + h1 @ p["w2"][li] + p["b2"][li]
        x = _layer_norm(x, p["lnf_g"], p["lnf_b"])
        eot = jnp.argmax(tokenized_prompts, axis=-1)
        return x[jnp.arange(B), eot] @ p["proj"]


# ---------------------------------------------------------------------------
# Deterministic parameter init.  The fused in_proj weight wqkv (L, D, 3D) has
# [q | k | v] column blocks, each head-major (head h occupies columns
# h*HD:(h+1)*HD of its block) — i.e. CLIP's in_proj_weight transposed.
# ---------------------------------------------------------------------------
def init_params(key):
    keys = iter(jax.random.split(key, 32))

    def nrm(shape, scale=0.02):
        return jax.random.normal(next(keys), shape, jnp.float32) * scale

    return {
        "pos_emb": nrm((N, D), 0.01),
        "ln1_g": 1.0 + nrm((L, 1, D), 0.01),
        "ln1_b": nrm((L, 1, D), 0.01),
        "wqkv": nrm((L, D, 3 * D)),
        "bqkv": nrm((L, 1, 3 * D), 0.01),
        "wo": nrm((L, D, D)),
        "bo": nrm((L, 1, D), 0.01),
        "ln2_g": 1.0 + nrm((L, 1, D), 0.01),
        "ln2_b": nrm((L, 1, D), 0.01),
        "w1": nrm((L, D, MLP)),
        "b1": nrm((L, 1, MLP), 0.01),
        "w2": nrm((L, MLP, D)),
        "b2": nrm((L, 1, D), 0.01),
        "lnf_g": 1.0 + nrm((1, D), 0.01),
        "lnf_b": nrm((1, D), 0.01),
        "proj": nrm((D, P)),
    }


if __name__ == "__main__":
    key = jax.random.PRNGKey(0)
    kp, kt, kc, kw = jax.random.split(key, 4)

    params = init_params(kw)
    prompts = jax.random.normal(kp, (B, N, D), jnp.float32)       # token embeddings
    tokenized_prompts = jax.random.randint(kt, (B, N), 0, 49408, dtype=jnp.int32)
    compound_prompts_deeper_text = [
        jax.random.normal(k, (N_CTX, D), jnp.float32) * 0.02
        for k in jax.random.split(kc, N_DEEP)
    ]

    out = text_encoder_forward(prompts, tokenized_prompts,
                               compound_prompts_deeper_text, params)
    out = jax.block_until_ready(out)

    ref = reference_forward(prompts, tokenized_prompts,
                            compound_prompts_deeper_text, params)
    ref = jax.block_until_ready(ref)

    assert out.shape == (B, P)
    max_err = float(jnp.max(jnp.abs(out - ref)))
    # tolerance accounts for bf16 matmul operands (~2^-8 relative) vs f32 ref
    assert max_err < 5e-3, f"mismatch vs reference: {max_err}"
    print("KERNEL_OK")
</pallas_src>

<mosaic_0001>
module attributes {stable_mosaic.version = 11 : i64} {
  func.func @text_encoder_kernel(%arg0: i32, %arg1: memref<2xi32, #tpu.memory_space<smem>>, %arg2: memref<2x8x32xf32, #tpu.memory_space<vmem>>, %arg3: memref<8x32xf32, #tpu.memory_space<vmem>>, %arg4: memref<1x2x32xf32, #tpu.memory_space<vmem>>, %arg5: memref<1x1x32xf32, #tpu.memory_space<vmem>>, %arg6: memref<1x1x32xf32, #tpu.memory_space<vmem>>, %arg7: memref<1x32x96xbf16, #tpu.memory_space<vmem>>, %arg8: memref<1x1x96xf32, #tpu.memory_space<vmem>>, %arg9: memref<1x32x32xbf16, #tpu.memory_space<vmem>>, %arg10: memref<1x1x32xf32, #tpu.memory_space<vmem>>, %arg11: memref<1x1x32xf32, #tpu.memory_space<vmem>>, %arg12: memref<1x1x32xf32, #tpu.memory_space<vmem>>, %arg13: memref<1x32x128xbf16, #tpu.memory_space<vmem>>, %arg14: memref<1x1x128xf32, #tpu.memory_space<vmem>>, %arg15: memref<1x128x32xbf16, #tpu.memory_space<vmem>>, %arg16: memref<1x1x32xf32, #tpu.memory_space<vmem>>, %arg17: memref<1x32xf32, #tpu.memory_space<vmem>>, %arg18: memref<1x32xf32, #tpu.memory_space<vmem>>, %arg19: memref<32x32xbf16, #tpu.memory_space<vmem>>, %arg20: memref<2x32xf32, #tpu.memory_space<vmem>>, %arg21: memref<16x32xf32, #tpu.memory_space<vmem>>) attributes {dimension_semantics = [#tpu.dimension_semantics<arbitrary>], iteration_bounds = array<i64: 3>, scalar_prefetch = 1 : i64, scratch_operands = 1 : i64, tpu.core_type = #tpu.core_type<tc>, window_params = [{pipeline_mode = #tpu.pipeline_mode<synchronous>, transform_indices = @transform_0, window_bounds = array<i64: 2, 8, 32>}, {pipeline_mode = #tpu.pipeline_mode<synchronous>, transform_indices = @transform_1, window_bounds = array<i64: 8, 32>}, {transform_indices = @transform_2, window_bounds = array<i64: 1, 2, 32>}, {transform_indices = @transform_3, window_bounds = array<i64: 1, 1, 32>}, {transform_indices = @transform_4, window_bounds = array<i64: 1, 1, 32>}, {transform_indices = @transform_5, window_bounds = array<i64: 1, 32, 96>}, {transform_indices = @transform_6, window_bounds = array<i64: 1, 1, 96>}, {transform_indices = @transform_7, window_bounds = array<i64: 1, 32, 32>}, {transform_indices = @transform_8, window_bounds = array<i64: 1, 1, 32>}, {transform_indices = @transform_9, window_bounds = array<i64: 1, 1, 32>}, {transform_indices = @transform_10, window_bounds = array<i64: 1, 1, 32>}, {transform_indices = @transform_11, window_bounds = array<i64: 1, 32, 128>}, {transform_indices = @transform_12, window_bounds = array<i64: 1, 1, 128>}, {transform_indices = @transform_13, window_bounds = array<i64: 1, 128, 32>}, {transform_indices = @transform_14, window_bounds = array<i64: 1, 1, 32>}, {pipeline_mode = #tpu.pipeline_mode<synchronous>, transform_indices = @transform_15, window_bounds = array<i64: 1, 32>}, {pipeline_mode = #tpu.pipeline_mode<synchronous>, transform_indices = @transform_16, window_bounds = array<i64: 1, 32>}, {pipeline_mode = #tpu.pipeline_mode<synchronous>, transform_indices = @transform_17, window_bounds = array<i64: 32, 32>}, {pipeline_mode = #tpu.pipeline_mode<synchronous>, transform_indices = @transform_18, window_bounds = array<i64: 2, 32>}]} {
    %c0_i32 = arith.constant 0 : i32
    %0 = arith.cmpi eq, %arg0, %c0_i32 : i32
    %1 = arith.extui %0 : i1 to i32
    %c0_i32_0 = arith.constant 0 : i32
    %2 = arith.cmpi ne, %1, %c0_i32_0 : i32
    scf.if %2 {
      %c0_64 = arith.constant 0 : index
      %c0_65 = arith.constant 0 : index
      %c0_66 = arith.constant 0 : index
      %171 = vector.load %arg2[%c0_64, %c0_65, %c0_66] : memref<2x8x32xf32, #tpu.memory_space<vmem>>, vector<2x8x32xf32>
      %c0_67 = arith.constant 0 : index
      %c0_68 = arith.constant 0 : index
      %172 = vector.load %arg3[%c0_67, %c0_68] : memref<8x32xf32, #tpu.memory_space<vmem>>, vector<8x32xf32>
      %173 = vector.shape_cast %172 : vector<8x32xf32> to vector<1x8x32xf32>
      %174 = vector.broadcast %173 : vector<1x8x32xf32> to vector<2x8x32xf32>
      %175 = arith.addf %171, %174 : vector<2x8x32xf32>
      %176 = vector.shape_cast %175 : vector<2x8x32xf32> to vector<16x32xf32>
      %c0_69 = arith.constant 0 : index
      %c0_70 = arith.constant 0 : index
      %177 = vector.load %arg21[%c0_69, %c0_70] : memref<16x32xf32, #tpu.memory_space<vmem>>, vector<16x32xf32>
      tpu.vector_store %arg21[%c0_69, %c0_70], %176 {strides = array<i32>} : memref<16x32xf32, #tpu.memory_space<vmem>>, vector<16x32xf32>,
    } else {
    }
    %c1_i32 = arith.constant 1 : i32
    %3 = arith.cmpi sge, %arg0, %c1_i32 : i32
    %c2_i32 = arith.constant 2 : i32
    %4 = arith.cmpi sle, %arg0, %c2_i32 : i32
    %5 = arith.andi %3, %4 : i1
    %6 = arith.extui %5 : i1 to i32
    %c0_i32_1 = arith.constant 0 : i32
    %7 = arith.cmpi ne, %6, %c0_i32_1 : i32
    scf.if %7 {
      %c0_64 = arith.constant 0 : index
      %c0_65 = arith.constant 0 : index
      %c0_66 = arith.constant 0 : index
      %171 = vector.load %arg4[%c0_64, %c0_65, %c0_66] : memref<1x2x32xf32, #tpu.memory_space<vmem>>, vector<1x2x32xf32>
      %172 = vector.shape_cast %171 : vector<1x2x32xf32> to vector<2x32xf32>
      %173 = tpu.iota {dimensions = array<i32: 0>} : vector<16x1xi32>
      %c8_i32 = arith.constant 8 : i32
      %c0_i32_67 = arith.constant 0 : i32
      %174 = arith.cmpi eq, %c8_i32, %c0_i32_67 : i32
      %c1_i32_68 = arith.constant 1 : i32
      %175 = arith.select %174, %c1_i32_68, %c8_i32 : i32
      %176 = vector.broadcast %175 : i32 to vector<16x1xi32>
      %177 = arith.remsi %173, %176 : vector<16x1xi32>
      %c0_i32_69 = arith.constant 0 : i32
      %178 = vector.broadcast %c0_i32_69 : i32 to vector<16x1xi32>
      %179 = arith.cmpi ne, %177, %178 : vector<16x1xi32>
      %c0_i32_70 = arith.constant 0 : i32
      %180 = vector.broadcast %c0_i32_70 : i32 to vector<16x1xi32>
      %181 = arith.cmpi slt, %177, %180 : vector<16x1xi32>
      %c0_i32_71 = arith.constant 0 : i32
      %182 = arith.cmpi slt, %175, %c0_i32_71 : i32
      %183 = vector.broadcast %182 : i1 to vector<16x1xi1>
      %184 = vector.broadcast %183 : vector<16x1xi1> to vector<16x1xi1>
      %185 = arith.xori %181, %184 : vector<16x1xi1>
      %186 = arith.andi %185, %179 : vector<16x1xi1>
      %187 = vector.broadcast %175 : i32 to vector<16x1xi32>
      %188 = arith.addi %177, %187 : vector<16x1xi32>
      %189 = arith.select %186, %188, %177 : vector<16x1xi1>, vector<16x1xi32>
      %c0_72 = arith.constant 0 : index
      %c0_73 = arith.constant 0 : index
      %190 = vector.load %arg21[%c0_72, %c0_73] : memref<16x32xf32, #tpu.memory_space<vmem>>, vector<16x32xf32>
      %c1_i32_74 = arith.constant 1 : i32
      %191 = vector.broadcast %c1_i32_74 : i32 to vector<16x1xi32>
      %192 = arith.cmpi eq, %189, %191 : vector<16x1xi32>
      %193 = vector.extract_strided_slice %172 {offsets = [0, 0], sizes = [1, 32], strides = [1, 1]} : vector<2x32xf32> to vector<1x32xf32>
      %194 = vector.shape_cast %192 : vector<16x1xi1> to vector<16x1xi1>
      %195 = vector.broadcast %194 : vector<16x1xi1> to vector<16x32xi1>
      %196 = vector.shape_cast %193 : vector<1x32xf32> to vector<1x32xf32>
      %197 = vector.broadcast %196 : vector<1x32xf32> to vector<16x32xf32>
      %198 = arith.select %195, %197, %190 : vector<16x32xi1>, vector<16x32xf32>
      %c2_i32_75 = arith.constant 2 : i32
      %199 = vector.broadcast %c2_i32_75 : i32 to vector<16x1xi32>
      %200 = arith.cmpi eq, %189, %199 : vector<16x1xi32>
      %201 = vector.extract_strided_slice %172 {offsets = [1, 0], sizes = [1, 32], strides = [1, 1]} : vector<2x32xf32> to vector<1x32xf32>
      %202 = vector.shape_cast %200 : vector<16x1xi1> to vector<16x1xi1>
      %203 = vector.broadcast %202 : vector<16x1xi1> to vector<16x32xi1>
      %204 = vector.shape_cast %201 : vector<1x32xf32> to vector<1x32xf32>
      %205 = vector.broadcast %204 : vector<1x32xf32> to vector<16x32xf32>
      %206 = arith.select %203, %205, %198 : vector<16x32xi1>, vector<16x32xf32>
      %c0_76 = arith.constant 0 : index
      %c0_77 = arith.constant 0 : index
      %207 = vector.load %arg21[%c0_76, %c0_77] : memref<16x32xf32, #tpu.memory_space<vmem>>, vector<16x32xf32>
      tpu.vector_store %arg21[%c0_76, %c0_77], %206 {strides = array<i32>} : memref<16x32xf32, #tpu.memory_space<vmem>>, vector<16x32xf32>,
    } else {
    }
    %c0 = arith.constant 0 : index
    %c0_2 = arith.constant 0 : index
    %8 = vector.load %arg21[%c0, %c0_2] : memref<16x32xf32, #tpu.memory_space<vmem>>, vector<16x32xf32>
    %9 = tpu.iota {dimensions = array<i32: 0>} : vector<8x8xi32>
    %10 = tpu.iota {dimensions = array<i32: 1>} : vector<8x8xi32>
    %11 = arith.cmpi sgt, %10, %9 : vector<8x8xi32>
    %cst = arith.constant -1.000000e+30 : f32
    %cst_3 = arith.constant 0.000000e+00 : f32
    %12 = vector.broadcast %cst : f32 to vector<8x8xf32>
    %13 = vector.broadcast %cst_3 : f32 to vector<8x8xf32>
    %14 = arith.select %11, %12, %13 : vector<8x8xi1>, vector<8x8xf32>
    %c0_4 = arith.constant 0 : index
    %c0_5 = arith.constant 0 : index
    %c0_6 = arith.constant 0 : index
    %15 = vector.load %arg5[%c0_4, %c0_5, %c0_6] : memref<1x1x32xf32, #tpu.memory_space<vmem>>, vector<1x1x32xf32>
    %16 = vector.shape_cast %15 : vector<1x1x32xf32> to vector<1x32xf32>
    %c0_7 = arith.constant 0 : index
    %c0_8 = arith.constant 0 : index
    %c0_9 = arith.constant 0 : index
    %17 = vector.load %arg6[%c0_7, %c0_8, %c0_9] : memref<1x1x32xf32, #tpu.memory_space<vmem>>, vector<1x1x32xf32>
    %18 = vector.shape_cast %17 : vector<1x1x32xf32> to vector<1x32xf32>
    %cst_10 = arith.constant dense<0.000000e+00> : vector<16xf32>
    %19 = vector.multi_reduction <add>, %8, %cst_10 [1] : vector<16x32xf32> to vector<16xf32>
    %20 = vector.shape_cast %19 : vector<16xf32> to vector<16x1xf32>
    %cst_11 = arith.constant 3.200000e+01 : f32
    %21 = vector.broadcast %cst_11 : f32 to vector<16x1xf32>
    %22 = arith.divf %20, %21 : vector<16x1xf32>
    %23 = arith.mulf %8, %8 : vector<16x32xf32>
    %cst_12 = arith.constant dense<0.000000e+00> : vector<16xf32>
    %24 = vector.multi_reduction <add>, %23, %cst_12 [1] : vector<16x32xf32> to vector<16xf32>
    %25 = vector.shape_cast %24 : vector<16xf32> to vector<16x1xf32>
    %cst_13 = arith.constant 3.200000e+01 : f32
    %26 = vector.broadcast %cst_13 : f32 to vector<16x1xf32>
    %27 = arith.divf %25, %26 : vector<16x1xf32>
    %28 = arith.mulf %22, %22 : vector<16x1xf32>
    %29 = arith.subf %27, %28 : vector<16x1xf32>
    %30 = vector.broadcast %22 : vector<16x1xf32> to vector<16x32xf32>
    %31 = arith.subf %8, %30 : vector<16x32xf32>
    %cst_14 = arith.constant 9.99999974E-6 : f32
    %32 = vector.broadcast %cst_14 : f32 to vector<16x1xf32>
    %33 = arith.addf %29, %32 : vector<16x1xf32>
    %34 = math.rsqrt %33 : vector<16x1xf32>
    %35 = vector.broadcast %34 : vector<16x1xf32> to vector<16x32xf32>
    %36 = arith.mulf %31, %35 : vector<16x32xf32>
    %37 = vector.broadcast %16 : vector<1x32xf32> to vector<16x32xf32>
    %38 = arith.mulf %36, %37 : vector<16x32xf32>
    %39 = vector.broadcast %18 : vector<1x32xf32> to vector<16x32xf32>
    %40 = arith.addf %38, %39 : vector<16x32xf32>
    %41 = arith.truncf %40 : vector<16x32xf32> to vector<16x32xbf16>
    %c0_15 = arith.constant 0 : index
    %c0_16 = arith.constant 0 : index
    %c0_17 = arith.constant 0 : index
    %42 = vector.load %arg7[%c0_15, %c0_16, %c0_17] : memref<1x32x96xbf16, #tpu.memory_space<vmem>>, vector<1x32x96xbf16>
    %43 = vector.shape_cast %42 : vector<1x32x96xbf16> to vector<32x96xbf16>
    %cst_18 = arith.constant dense<0.000000e+00> : vector<16x96xf32>
    %44 = tpu.matmul %41, %43, %cst_18 {dimension_numbers = #tpu.dot_dimension_numbers<[1], [0], [0], [1], [0, 0, 1, 1], [], []>} : vector<16x32xbf16>, vector<32x96xbf16>, vector<16x96xf32> -> vector<16x96xf32>
    %c0_19 = arith.constant 0 : index
    %c0_20 = arith.constant 0 : index
    %c0_21 = arith.constant 0 : index
    %45 = vector.load %arg8[%c0_19, %c0_20, %c0_21] : memref<1x1x96xf32, #tpu.memory_space<vmem>>, vector<1x1x96xf32>
    %46 = vector.shape_cast %45 : vector<1x1x96xf32> to vector<1x96xf32>
    %47 = vector.broadcast %46 : vector<1x96xf32> to vector<16x96xf32>
    %48 = arith.addf %44, %47 : vector<16x96xf32>
    %49 = vector.extract_strided_slice %48 {offsets = [0, 0], sizes = [16, 32], strides = [1, 1]} : vector<16x96xf32> to vector<16x32xf32>
    %50 = vector.extract_strided_slice %49 {offsets = [0, 0], sizes = [16, 8], strides = [1, 1]} : vector<16x32xf32> to vector<16x8xf32>
    %51 = vector.shape_cast %50 : vector<16x8xf32> to vector<2x8x8xf32>
    %52 = vector.extract_strided_slice %49 {offsets = [0, 8], sizes = [16, 8], strides = [1, 1]} : vector<16x32xf32> to vector<16x8xf32>
    %53 = vector.shape_cast %52 : vector<16x8xf32> to vector<2x8x8xf32>
    %54 = vector.extract_strided_slice %49 {offsets = [0, 16], sizes = [16, 8], strides = [1, 1]} : vector<16x32xf32> to vector<16x8xf32>
    %55 = vector.shape_cast %54 : vector<16x8xf32> to vector<2x8x8xf32>
    %56 = vector.extract_strided_slice %49 {offsets = [0, 24], sizes = [16, 8], strides = [1, 1]} : vector<16x32xf32> to vector<16x8xf32>
    %57 = vector.shape_cast %56 : vector<16x8xf32> to vector<2x8x8xf32>
    %58 = tpu.concatenate %51, %53, %55, %57 in 0 : vector<2x8x8xf32>, vector<2x8x8xf32>, vector<2x8x8xf32>, vector<2x8x8xf32> -> vector<8x8x8xf32>
    %59 = arith.truncf %58 : vector<8x8x8xf32> to vector<8x8x8xbf16>
    %60 = vector.extract_strided_slice %48 {offsets = [0, 32], sizes = [16, 32], strides = [1, 1]} : vector<16x96xf32> to vector<16x32xf32>
    %61 = vector.extract_strided_slice %60 {offsets = [0, 0], sizes = [16, 8], strides = [1, 1]} : vector<16x32xf32> to vector<16x8xf32>
    %62 = vector.shape_cast %61 : vector<16x8xf32> to vector<2x8x8xf32>
    %63 = vector.extract_strided_slice %60 {offsets = [0, 8], sizes = [16, 8], strides = [1, 1]} : vector<16x32xf32> to vector<16x8xf32>
    %64 = vector.shape_cast %63 : vector<16x8xf32> to vector<2x8x8xf32>
    %65 = vector.extract_strided_slice %60 {offsets = [0, 16], sizes = [16, 8], strides = [1, 1]} : vector<16x32xf32> to vector<16x8xf32>
    %66 = vector.shape_cast %65 : vector<16x8xf32> to vector<2x8x8xf32>
    %67 = vector.extract_strided_slice %60 {offsets = [0, 24], sizes = [16, 8], strides = [1, 1]} : vector<16x32xf32> to vector<16x8xf32>
    %68 = vector.shape_cast %67 : vector<16x8xf32> to vector<2x8x8xf32>
    %69 = tpu.concatenate %62, %64, %66, %68 in 0 : vector<2x8x8xf32>, vector<2x8x8xf32>, vector<2x8x8xf32>, vector<2x8x8xf32> -> vector<8x8x8xf32>
    %70 = arith.truncf %69 : vector<8x8x8xf32> to vector<8x8x8xbf16>
    %71 = vector.extract_strided_slice %48 {offsets = [0, 64], sizes = [16, 32], strides = [1, 1]} : vector<16x96xf32> to vector<16x32xf32>
    %72 = vector.extract_strided_slice %71 {offsets = [0, 0], sizes = [16, 8], strides = [1, 1]} : vector<16x32xf32> to vector<16x8xf32>
    %73 = vector.shape_cast %72 : vector<16x8xf32> to vector<2x8x8xf32>
    %74 = vector.extract_strided_slice %71 {offsets = [0, 8], sizes = [16, 8], strides = [1, 1]} : vector<16x32xf32> to vector<16x8xf32>
    %75 = vector.shape_cast %74 : vector<16x8xf32> to vector<2x8x8xf32>
    %76 = vector.extract_strided_slice %71 {offsets = [0, 16], sizes = [16, 8], strides = [1, 1]} : vector<16x32xf32> to vector<16x8xf32>
    %77 = vector.shape_cast %76 : vector<16x8xf32> to vector<2x8x8xf32>
    %78 = vector.extract_strided_slice %71 {offsets = [0, 24], sizes = [16, 8], strides = [1, 1]} : vector<16x32xf32> to vector<16x8xf32>
    %79 = vector.shape_cast %78 : vector<16x8xf32> to vector<2x8x8xf32>
    %80 = tpu.concatenate %73, %75, %77, %79 in 0 : vector<2x8x8xf32>, vector<2x8x8xf32>, vector<2x8x8xf32>, vector<2x8x8xf32> -> vector<8x8x8xf32>
    %81 = arith.truncf %80 : vector<8x8x8xf32> to vector<8x8x8xbf16>
    "tpu.trace_start"() <{level = 10 : i32, message = "gqe,gke->gqk"}> : () -> ()
    %cst_22 = arith.constant dense<0.000000e+00> : vector<8x8x8xf32>
    %82 = tpu.matmul %59, %70, %cst_22 {dimension_numbers = #tpu.dot_dimension_numbers<[2], [2], [1], [1], [0, 0, 0, 1, 1, 1], [0], [0]>} : vector<8x8x8xbf16>, vector<8x8x8xbf16>, vector<8x8x8xf32> -> vector<8x8x8xf32>
    "tpu.trace_stop"() : () -> ()
    %83 = vector.shape_cast %14 : vector<8x8xf32> to vector<1x8x8xf32>
    %84 = vector.broadcast %83 : vector<1x8x8xf32> to vector<8x8x8xf32>
    %85 = arith.addf %82, %84 : vector<8x8x8xf32>
    %cst_23 = arith.constant dense<0xFF800000> : vector<8x8xf32>
    %86 = vector.multi_reduction <maximumf>, %85, %cst_23 [2] : vector<8x8x8xf32> to vector<8x8xf32>
    %87 = vector.shape_cast %86 : vector<8x8xf32> to vector<8x8x1xf32>
    %88 = vector.broadcast %87 : vector<8x8x1xf32> to vector<8x8x8xf32>
    %89 = arith.subf %85, %88 : vector<8x8x8xf32>
    %90 = math.exp %89 : vector<8x8x8xf32>
    %cst_24 = arith.constant dense<0.000000e+00> : vector<8x8xf32>
    %91 = vector.multi_reduction <add>, %90, %cst_24 [2] : vector<8x8x8xf32> to vector<8x8xf32>
    %92 = vector.shape_cast %91 : vector<8x8xf32> to vector<8x8x1xf32>
    %93 = tpu.reciprocal %92 {approx = true} : vector<8x8x1xf32> -> vector<8x8x1xf32>
    %94 = vector.broadcast %93 : vector<8x8x1xf32> to vector<8x8x8xf32>
    %95 = arith.mulf %90, %94 : vector<8x8x8xf32>
    %96 = arith.truncf %95 : vector<8x8x8xf32> to vector<8x8x8xbf16>
    "tpu.trace_start"() <{level = 10 : i32, message = "gqk,gke->gqe"}> : () -> ()
    %cst_25 = arith.constant dense<0.000000e+00> : vector<8x8x8xf32>
    %97 = tpu.matmul %96, %81, %cst_25 {dimension_numbers = #tpu.dot_dimension_numbers<[2], [1], [1], [2], [0, 0, 0, 1, 1, 2], [0], [0]>} : vector<8x8x8xbf16>, vector<8x8x8xbf16>, vector<8x8x8xf32> -> vector<8x8x8xf32>
    "tpu.trace_stop"() : () -> ()
    %98 = vector.extract_strided_slice %97 {offsets = [0, 0, 0], sizes = [2, 8, 8], strides = [1, 1, 1]} : vector<8x8x8xf32> to vector<2x8x8xf32>
    %99 = vector.shape_cast %98 : vector<2x8x8xf32> to vector<16x8xf32>
    %100 = vector.extract_strided_slice %97 {offsets = [2, 0, 0], sizes = [2, 8, 8], strides = [1, 1, 1]} : vector<8x8x8xf32> to vector<2x8x8xf32>
    %101 = vector.shape_cast %100 : vector<2x8x8xf32> to vector<16x8xf32>
    %102 = vector.extract_strided_slice %97 {offsets = [4, 0, 0], sizes = [2, 8, 8], strides = [1, 1, 1]} : vector<8x8x8xf32> to vector<2x8x8xf32>
    %103 = vector.shape_cast %102 : vector<2x8x8xf32> to vector<16x8xf32>
    %104 = vector.extract_strided_slice %97 {offsets = [6, 0, 0], sizes = [2, 8, 8], strides = [1, 1, 1]} : vector<8x8x8xf32> to vector<2x8x8xf32>
    %105 = vector.shape_cast %104 : vector<2x8x8xf32> to vector<16x8xf32>
    %106 = tpu.concatenate %99, %101, %103, %105 in 1 : vector<16x8xf32>, vector<16x8xf32>, vector<16x8xf32>, vector<16x8xf32> -> vector<16x32xf32>
    %107 = arith.truncf %106 : vector<16x32xf32> to vector<16x32xbf16>
    %c0_26 = arith.constant 0 : index
    %c0_27 = arith.constant 0 : index
    %c0_28 = arith.constant 0 : index
    %108 = vector.load %arg9[%c0_26, %c0_27, %c0_28] : memref<1x32x32xbf16, #tpu.memory_space<vmem>>, vector<1x32x32xbf16>
    %109 = vector.shape_cast %108 : vector<1x32x32xbf16> to vector<32x32xbf16>
    %cst_29 = arith.constant dense<0.000000e+00> : vector<16x32xf32>
    %110 = tpu.matmul %107, %109, %cst_29 {dimension_numbers = #tpu.dot_dimension_numbers<[1], [0], [0], [1], [0, 0, 1, 1], [], []>} : vector<16x32xbf16>, vector<32x32xbf16>, vector<16x32xf32> -> vector<16x32xf32>
    %c0_30 = arith.constant 0 : index
    %c0_31 = arith.constant 0 : index
    %c0_32 = arith.constant 0 : index
    %111 = vector.load %arg10[%c0_30, %c0_31, %c0_32] : memref<1x1x32xf32, #tpu.memory_space<vmem>>, vector<1x1x32xf32>
    %112 = vector.shape_cast %111 : vector<1x1x32xf32> to vector<1x32xf32>
    %113 = vector.broadcast %112 : vector<1x32xf32> to vector<16x32xf32>
    %114 = arith.addf %110, %113 : vector<16x32xf32>
    %115 = arith.addf %8, %114 : vector<16x32xf32>
    %c0_33 = arith.constant 0 : index
    %c0_34 = arith.constant 0 : index
    %c0_35 = arith.constant 0 : index
    %116 = vector.load %arg11[%c0_33, %c0_34, %c0_35] : memref<1x1x32xf32, #tpu.memory_space<vmem>>, vector<1x1x32xf32>
    %117 = vector.shape_cast %116 : vector<1x1x32xf32> to vector<1x32xf32>
    %c0_36 = arith.constant 0 : index
    %c0_37 = arith.constant 0 : index
    %c0_38 = arith.constant 0 : index
    %118 = vector.load %arg12[%c0_36, %c0_37, %c0_38] : memref<1x1x32xf32, #tpu.memory_space<vmem>>, vector<1x1x32xf32>
    %119 = vector.shape_cast %118 : vector<1x1x32xf32> to vector<1x32xf32>
    %cst_39 = arith.constant dense<0.000000e+00> : vector<16xf32>
    %120 = vector.multi_reduction <add>, %115, %cst_39 [1] : vector<16x32xf32> to vector<16xf32>
    %121 = vector.shape_cast %120 : vector<16xf32> to vector<16x1xf32>
    %cst_40 = arith.constant 3.200000e+01 : f32
    %122 = vector.broadcast %cst_40 : f32 to vector<16x1xf32>
    %123 = arith.divf %121, %122 : vector<16x1xf32>
    %124 = arith.mulf %115, %115 : vector<16x32xf32>
    %cst_41 = arith.constant dense<0.000000e+00> : vector<16xf32>
    %125 = vector.multi_reduction <add>, %124, %cst_41 [1] : vector<16x32xf32> to vector<16xf32>
    %126 = vector.shape_cast %125 : vector<16xf32> to vector<16x1xf32>
    %cst_42 = arith.constant 3.200000e+01 : f32
    %127 = vector.broadcast %cst_42 : f32 to vector<16x1xf32>
    %128 = arith.divf %126, %127 : vector<16x1xf32>
    %129 = arith.mulf %123, %123 : vector<16x1xf32>
    %130 = arith.subf %128, %129 : vector<16x1xf32>
    %131 = vector.broadcast %123 : vector<16x1xf32> to vector<16x32xf32>
    %132 = arith.subf %115, %131 : vector<16x32xf32>
    %cst_43 = arith.constant 9.99999974E-6 : f32
    %133 = vector.broadcast %cst_43 : f32 to vector<16x1xf32>
    %134 = arith.addf %130, %133 : vector<16x1xf32>
    %135 = math.rsqrt %134 : vector<16x1xf32>
    %136 = vector.broadcast %135 : vector<16x1xf32> to vector<16x32xf32>
    %137 = arith.mulf %132, %136 : vector<16x32xf32>
    %138 = vector.broadcast %117 : vector<1x32xf32> to vector<16x32xf32>
    %139 = arith.mulf %137, %138 : vector<16x32xf32>
    %140 = vector.broadcast %119 : vector<1x32xf32> to vector<16x32xf32>
    %141 = arith.addf %139, %140 : vector<16x32xf32>
    %142 = arith.truncf %141 : vector<16x32xf32> to vector<16x32xbf16>
    %c0_44 = arith.constant 0 : index
    %c0_45 = arith.constant 0 : index
    %c0_46 = arith.constant 0 : index
    %143 = vector.load %arg13[%c0_44, %c0_45, %c0_46] : memref<1x32x128xbf16, #tpu.memory_space<vmem>>, vector<1x32x128xbf16>
    %144 = vector.shape_cast %143 : vector<1x32x128xbf16> to vector<32x128xbf16>
    %cst_47 = arith.constant dense<0.000000e+00> : vector<16x128xf32>
    %145 = tpu.matmul %142, %144, %cst_47 {dimension_numbers = #tpu.dot_dimension_numbers<[1], [0], [0], [1], [0, 0, 1, 1], [], []>} : vector<16x32xbf16>, vector<32x128xbf16>, vector<16x128xf32> -> vector<16x128xf32>
    %c0_48 = arith.constant 0 : index
    %c0_49 = arith.constant 0 : index
    %c0_50 = arith.constant 0 : index
    %146 = vector.load %arg14[%c0_48, %c0_49, %c0_50] : memref<1x1x128xf32, #tpu.memory_space<vmem>>, vector<1x1x128xf32>
    %147 = vector.shape_cast %146 : vector<1x1x128xf32> to vector<1x128xf32>
    %148 = vector.broadcast %147 : vector<1x128xf32> to vector<16x128xf32>
    %149 = arith.addf %145, %148 : vector<16x128xf32>
    %cst_51 = arith.constant 1.702000e+00 : f32
    %150 = vector.broadcast %cst_51 : f32 to vector<16x128xf32>
    %151 = arith.mulf %150, %149 : vector<16x128xf32>
    %152 = arith.negf %151 : vector<16x128xf32>
    %153 = math.exp %152 : vector<16x128xf32>
    %cst_52 = arith.constant 1.000000e+00 : f32
    %154 = vector.broadcast %cst_52 : f32 to vector<16x128xf32>
    %155 = arith.addf %154, %153 : vector<16x128xf32>
    %156 = arith.divf %154, %155 : vector<16x128xf32>
    %157 = arith.mulf %149, %156 : vector<16x128xf32>
    %158 = arith.truncf %157 : vector<16x128xf32> to vector<16x128xbf16>
    %c0_53 = arith.constant 0 : index
    %c0_54 = arith.constant 0 : index
    %c0_55 = arith.constant 0 : index
    %159 = vector.load %arg15[%c0_53, %c0_54, %c0_55] : memref<1x128x32xbf16, #tpu.memory_space<vmem>>, vector<1x128x32xbf16>
    %160 = vector.shape_cast %159 : vector<1x128x32xbf16> to vector<128x32xbf16>
    %cst_56 = arith.constant dense<0.000000e+00> : vector<16x32xf32>
    %161 = tpu.matmul %158, %160, %cst_56 {dimension_numbers = #tpu.dot_dimension_numbers<[1], [0], [0], [1], [0, 0, 1, 1], [], []>} : vector<16x128xbf16>, vector<128x32xbf16>, vector<16x32xf32> -> vector<16x32xf32>
    %c0_57 = arith.constant 0 : index
    %c0_58 = arith.constant 0 : index
    %c0_59 = arith.constant 0 : index
    %162 = vector.load %arg16[%c0_57, %c0_58, %c0_59] : memref<1x1x32xf32, #tpu.memory_space<vmem>>, vector<1x1x32xf32>
    %163 = vector.shape_cast %162 : vector<1x1x32xf32> to vector<1x32xf32>
    %164 = vector.broadcast %163 : vector<1x32xf32> to vector<16x32xf32>
    %165 = arith.addf %161, %164 : vector<16x32xf32>
    %166 = arith.addf %115, %165 : vector<16x32xf32>
    %c0_60 = arith.constant 0 : index
    %c0_61 = arith.constant 0 : index
    %167 = vector.load %arg21[%c0_60, %c0_61] : memref<16x32xf32, #tpu.memory_space<vmem>>, vector<16x32xf32>
    tpu.vector_store %arg21[%c0_60, %c0_61], %166 {strides = array<i32>} : memref<16x32xf32, #tpu.memory_space<vmem>>, vector<16x32xf32>,
    %c2_i32_62 = arith.constant 2 : i32
    %168 = arith.cmpi eq, %arg0, %c2_i32_62 : i32
    %169 = arith.extui %168 : i1 to i32
    %c0_i32_63 = arith.constant 0 : i32
    %170 = arith.cmpi ne, %169, %c0_i32_63 : i32
    scf.if %170 {
      %c0_64 = arith.constant 0 : index
      %c0_65 = arith.constant 0 : index
      %171 = vector.load %arg21[%c0_64, %c0_65] : memref<16x32xf32, #tpu.memory_space<vmem>>, vector<16x32xf32>
      %c0_66 = arith.constant 0 : index
      %c0_67 = arith.constant 0 : index
      %172 = vector.load %arg17[%c0_66, %c0_67] : memref<1x32xf32, #tpu.memory_space<vmem>>, vector<1x32xf32>
      %c0_68 = arith.constant 0 : index
      %c0_69 = arith.constant 0 : index
      %173 = vector.load %arg18[%c0_68, %c0_69] : memref<1x32xf32, #tpu.memory_space<vmem>>, vector<1x32xf32>
      %cst_70 = arith.constant dense<0.000000e+00> : vector<16xf32>
      %174 = vector.multi_reduction <add>, %171, %cst_70 [1] : vector<16x32xf32> to vector<16xf32>
      %175 = vector.shape_cast %174 : vector<16xf32> to vector<16x1xf32>
      %cst_71 = arith.constant 3.200000e+01 : f32
      %176 = vector.broadcast %cst_71 : f32 to vector<16x1xf32>
      %177 = arith.divf %175, %176 : vector<16x1xf32>
      %178 = arith.mulf %171, %171 : vector<16x32xf32>
      %cst_72 = arith.constant dense<0.000000e+00> : vector<16xf32>
      %179 = vector.multi_reduction <add>, %178, %cst_72 [1] : vector<16x32xf32> to vector<16xf32>
      %180 = vector.shape_cast %179 : vector<16xf32> to vector<16x1xf32>
      %cst_73 = arith.constant 3.200000e+01 : f32
      %181 = vector.broadcast %cst_73 : f32 to vector<16x1xf32>
      %182 = arith.divf %180, %181 : vector<16x1xf32>
      %183 = arith.mulf %177, %177 : vector<16x1xf32>
      %184 = arith.subf %182, %183 : vector<16x1xf32>
      %185 = vector.broadcast %177 : vector<16x1xf32> to vector<16x32xf32>
      %186 = arith.subf %171, %185 : vector<16x32xf32>
      %cst_74 = arith.constant 9.99999974E-6 : f32
      %187 = vector.broadcast %cst_74 : f32 to vector<16x1xf32>
      %188 = arith.addf %184, %187 : vector<16x1xf32>
      %189 = math.rsqrt %188 : vector<16x1xf32>
      %190 = vector.broadcast %189 : vector<16x1xf32> to vector<16x32xf32>
      %191 = arith.mulf %186, %190 : vector<16x32xf32>
      %192 = vector.broadcast %172 : vector<1x32xf32> to vector<16x32xf32>
      %193 = arith.mulf %191, %192 : vector<16x32xf32>
      %194 = vector.broadcast %173 : vector<1x32xf32> to vector<16x32xf32>
      %195 = arith.addf %193, %194 : vector<16x32xf32>
      %196 = tpu.iota {dimensions = array<i32: 1>} : vector<2x16xi32>
      %197 = tpu.iota {dimensions = array<i32: 0>} : vector<2x16xi32>
      %c0_i32_75 = arith.constant 0 : i32
      %198 = vector.broadcast %c0_i32_75 : i32 to vector<2x16xi32>
      %c0_i32_76 = arith.constant 0 : i32
      %199 = vector.broadcast %c0_i32_76 : i32 to vector<2x16xi32>
      %200 = arith.cmpi eq, %197, %199 : vector<2x16xi32>
      %c0_77 = arith.constant 0 : index
      %201 = memref.load %arg1[%c0_77] : memref<2xi32, #tpu.memory_space<smem>>
      %c0_i32_78 = arith.constant 0 : i32
      %202 = arith.addi %201, %c0_i32_78 : i32
      %203 = vector.broadcast %202 : i32 to vector<2x16xi32>
      %204 = arith.select %200, %203, %198 : vector<2x16xi1>, vector<2x16xi32>
      %c1_i32_79 = arith.constant 1 : i32
      %205 = vector.broadcast %c1_i32_79 : i32 to vector<2x16xi32>
      %206 = arith.cmpi eq, %197, %205 : vector<2x16xi32>
      %c1 = arith.constant 1 : index
      %207 = memref.load %arg1[%c1] : memref<2xi32, #tpu.memory_space<smem>>
      %c8_i32 = arith.constant 8 : i32
      %208 = arith.addi %207, %c8_i32 : i32
      %209 = vector.broadcast %208 : i32 to vector<2x16xi32>
      %210 = arith.select %206, %209, %204 : vector<2x16xi1>, vector<2x16xi32>
      %211 = arith.cmpi eq, %196, %210 : vector<2x16xi32>
      %212 = arith.extui %211 : vector<2x16xi1> to vector<2x16xi32>
      %213 = arith.sitofp %212 : vector<2x16xi32> to vector<2x16xf32>
      %cst_80 = arith.constant dense<0.000000e+00> : vector<2x32xf32>
      %214 = tpu.matmul %213, %195, %cst_80 {dimension_numbers = #tpu.dot_dimension_numbers<[1], [0], [0], [1], [0, 0, 1, 1], [], []>} : vector<2x16xf32>, vector<16x32xf32>, vector<2x32xf32> -> vector<2x32xf32>
      %215 = arith.truncf %214 : vector<2x32xf32> to vector<2x32xbf16>
      %c0_81 = arith.constant 0 : index
      %c0_82 = arith.constant 0 : index
      %216 = vector.load %arg19[%c0_81, %c0_82] : memref<32x32xbf16, #tpu.memory_space<vmem>>, vector<32x32xbf16>
      %cst_83 = arith.constant dense<0.000000e+00> : vector<2x32xf32>
      %217 = tpu.matmul %215, %216, %cst_83 {dimension_numbers = #tpu.dot_dimension_numbers<[1], [0], [0], [1], [0, 0, 1, 1], [], []>} : vector<2x32xbf16>, vector<32x32xbf16>, vector<2x32xf32> -> vector<2x32xf32>
      %c0_84 = arith.constant 0 : index
      %c0_85 = arith.constant 0 : index
      %218 = vector.load %arg20[%c0_84, %c0_85] : memref<2x32xf32, #tpu.memory_space<vmem>>, vector<2x32xf32>
      tpu.vector_store %arg20[%c0_84, %c0_85], %217 {strides = array<i32>} : memref<2x32xf32, #tpu.memory_space<vmem>>, vector<2x32xf32>,
    } else {
    }
    return
  }
  func.func @transform_0(%arg0: i32, %arg1: memref<2xi32, #tpu.memory_space<smem>>) -> (i32, i32, i32) {
    %c0_i32 = arith.constant 0 : i32
    %c0_i32_0 = arith.constant 0 : i32
    %c0_i32_1 = arith.constant 0 : i32
    %c0_i32_2 = arith.constant 0 : i32
    return %c0_i32, %c0_i32_0, %c0_i32_1 : i32, i32, i32
  }
  func.func @transform_1(%arg0: i32, %arg1: memref<2xi32, #tpu.memory_space<smem>>) -> (i32, i32) {
    %c0_i32 = arith.constant 0 : i32
    %c0_i32_0 = arith.constant 0 : i32
    %c0_i32_1 = arith.constant 0 : i32
    return %c0_i32, %c0_i32_0 : i32, i32
  }
  func.func @transform_2(%arg0: i32, %arg1: memref<2xi32, #tpu.memory_space<smem>>) -> (i32, i32, i32) {
    %c1_i32 = arith.constant 1 : i32
    %0 = arith.subi %arg0, %c1_i32 : i32
    %c0_i32 = arith.constant 0 : i32
    %c1_i32_0 = arith.constant 1 : i32
    %1 = arith.maxsi %c0_i32, %0 : i32
    %2 = arith.minsi %c1_i32_0, %1 : i32
    %c0_i32_1 = arith.constant 0 : i32
    %c0_i32_2 = arith.constant 0 : i32
    %c0_i32_3 = arith.constant 0 : i32
    return %2, %c0_i32_1, %c0_i32_2 : i32, i32, i32
  }
  func.func @transform_3(%arg0: i32, %arg1: memref<2xi32, #tpu.memory_space<smem>>) -> (i32, i32, i32) {
    %c0_i32 = arith.constant 0 : i32
    %c0_i32_0 = arith.constant 0 : i32
    %c0_i32_1 = arith.constant 0 : i32
    return %arg0, %c0_i32, %c0_i32_0 : i32, i32, i32
  }
  func.func @transform_4(%arg0: i32, %arg1: memref<2xi32, #tpu.memory_space<smem>>) -> (i32, i32, i32) {
    %c0_i32 = arith.constant 0 : i32
    %c0_i32_0 = arith.constant 0 : i32
    %c0_i32_1 = arith.constant 0 : i32
    return %arg0, %c0_i32, %c0_i32_0 : i32, i32, i32
  }
  func.func @transform_5(%arg0: i32, %arg1: memref<2xi32, #tpu.memory_space<smem>>) -> (i32, i32, i32) {
    %c0_i32 = arith.constant 0 : i32
    %c0_i32_0 = arith.constant 0 : i32
    %c0_i32_1 = arith.constant 0 : i32
    return %arg0, %c0_i32, %c0_i32_0 : i32, i32, i32
  }
  func.func @transform_6(%arg0: i32, %arg1: memref<2xi32, #tpu.memory_space<smem>>) -> (i32, i32, i32) {
    %c0_i32 = arith.constant 0 : i32
    %c0_i32_0 = arith.constant 0 : i32
    %c0_i32_1 = arith.constant 0 : i32
    return %arg0, %c0_i32, %c0_i32_0 : i32, i32, i32
  }
  func.func @transform_7(%arg0: i32, %arg1: memref<2xi32, #tpu.memory_space<smem>>) -> (i32, i32, i32) {
    %c0_i32 = arith.constant 0 : i32
    %c0_i32_0 = arith.constant 0 : i32
    %c0_i32_1 = arith.constant 0 : i32
    return %arg0, %c0_i32, %c0_i32_0 : i32, i32, i32
  }
  func.func @transform_8(%arg0: i32, %arg1: memref<2xi32, #tpu.memory_space<smem>>) -> (i32, i32, i32) {
    %c0_i32 = arith.constant 0 : i32
    %c0_i32_0 = arith.constant 0 : i32
    %c0_i32_1 = arith.constant 0 : i32
    return %arg0, %c0_i32, %c0_i32_0 : i32, i32, i32
  }
  func.func @transform_9(%arg0: i32, %arg1: memref<2xi32, #tpu.memory_space<smem>>) -> (i32, i32, i32) {
    %c0_i32 = arith.constant 0 : i32
    %c0_i32_0 = arith.constant 0 : i32
    %c0_i32_1 = arith.constant 0 : i32
    return %arg0, %c0_i32, %c0_i32_0 : i32, i32, i32
  }
  func.func @transform_10(%arg0: i32, %arg1: memref<2xi32, #tpu.memory_space<smem>>) -> (i32, i32, i32) {
    %c0_i32 = arith.constant 0 : i32
    %c0_i32_0 = arith.constant 0 : i32
    %c0_i32_1 = arith.constant 0 : i32
    return %arg0, %c0_i32, %c0_i32_0 : i32, i32, i32
  }
  func.func @transform_11(%arg0: i32, %arg1: memref<2xi32, #tpu.memory_space<smem>>) -> (i32, i32, i32) {
    %c0_i32 = arith.constant 0 : i32
    %c0_i32_0 = arith.constant 0 : i32
    %c0_i32_1 = arith.constant 0 : i32
    return %arg0, %c0_i32, %c0_i32_0 : i32, i32, i32
  }
  func.func @transform_12(%arg0: i32, %arg1: memref<2xi32, #tpu.memory_space<smem>>) -> (i32, i32, i32) {
    %c0_i32 = arith.constant 0 : i32
    %c0_i32_0 = arith.constant 0 : i32
    %c0_i32_1 = arith.constant 0 : i32
    return %arg0, %c0_i32, %c0_i32_0 : i32, i32, i32
  }
  func.func @transform_13(%arg0: i32, %arg1: memref<2xi32, #tpu.memory_space<smem>>) -> (i32, i32, i32) {
    %c0_i32 = arith.constant 0 : i32
    %c0_i32_0 = arith.constant 0 : i32
    %c0_i32_1 = arith.constant 0 : i32
    return %arg0, %c0_i32, %c0_i32_0 : i32, i32, i32
  }
  func.func @transform_14(%arg0: i32, %arg1: memref<2xi32, #tpu.memory_space<smem>>) -> (i32, i32, i32) {
    %c0_i32 = arith.constant 0 : i32
    %c0_i32_0 = arith.constant 0 : i32
    %c0_i32_1 = arith.constant 0 : i32
    return %arg0, %c0_i32, %c0_i32_0 : i32, i32, i32
  }
  func.func @transform_15(%arg0: i32, %arg1: memref<2xi32, #tpu.memory_space<smem>>) -> (i32, i32) {
    %c0_i32 = arith.constant 0 : i32
    %c0_i32_0 = arith.constant 0 : i32
    %c0_i32_1 = arith.constant 0 : i32
    return %c0_i32, %c0_i32_0 : i32, i32
  }
  func.func @transform_16(%arg0: i32, %arg1: memref<2xi32, #tpu.memory_space<smem>>) -> (i32, i32) {
    %c0_i32 = arith.constant 0 : i32
    %c0_i32_0 = arith.constant 0 : i32
    %c0_i32_1 = arith.constant 0 : i32
    return %c0_i32, %c0_i32_0 : i32, i32
  }
  func.func @transform_17(%arg0: i32, %arg1: memref<2xi32, #tpu.memory_space<smem>>) -> (i32, i32) {
    %c0_i32 = arith.constant 0 : i32
    %c0_i32_0 = arith.constant 0 : i32
    %c0_i32_1 = arith.constant 0 : i32
    return %c0_i32, %c0_i32_0 : i32, i32
  }
  func.func @transform_18(%arg0: i32, %arg1: memref<2xi32, #tpu.memory_space<smem>>) -> (i32, i32) {
    %c0_i32 = arith.constant 0 : i32
    %c0_i32_0 = arith.constant 0 : i32
    %c0_i32_1 = arith.constant 0 : i32
    return %c0_i32, %c0_i32_0 : i32, i32
  }
}

</mosaic_0001>

<llo_original>
// kernel: tpu_custom_call.1
$region0: #{tpu_custom_call.1}
  #allocation0 [shape = 'u32[]', space=smem, size = 0x4, offset = 0x4, fixed_abs, tag = 'smem constant byte address 0x4 - core index']
  #allocation1 [shape = 'u32[72,128]{1,0:T(1,128)}', space=vmem, size = 0x9000, scoped, tag = 'internal scratch']
  #allocation2 [shape = 'f32[16,32]{1,0:T(8,128)}', space=vmem, size = 0x2000, scoped, tag = 'scratch operand']
  #allocation3 [shape = 's32[1]{0}', space=sflag, size = 0x4, scoped, tag = 'scoped memory for tpu_custom_call.1']
  #allocation4 [shape = 'u8[512]{0}', space=smem, size = 0x200, scoped, tag = 'prefetched SMEM operand 0']
  %s0 = inlined_call_operand.vmem [shape: s32[2], index: 0, kind: input, shape index: {}]
  %s1 = inlined_call_operand.vmem [shape: f32[2,8,32], index: 1, kind: input, shape index: {}]
  %s2 = inlined_call_operand.vmem [shape: f32[8,32], index: 2, kind: input, shape index: {}]
  %s3 = inlined_call_operand.vmem [shape: f32[2,2,32], index: 3, kind: input, shape index: {}]
  %s4 = inlined_call_operand.vmem [shape: f32[3,1,32], index: 4, kind: input, shape index: {}]
  %s5 = inlined_call_operand.vmem [shape: f32[3,1,32], index: 5, kind: input, shape index: {}]
  %s6 = inlined_call_operand.vmem [shape: bf16[3,32,96], index: 6, kind: input, shape index: {}]
  %s7 = inlined_call_operand.vmem [shape: f32[3,1,96], index: 7, kind: input, shape index: {}]
  %s8 = inlined_call_operand.vmem [shape: bf16[3,32,32], index: 8, kind: input, shape index: {}]
  %s9 = inlined_call_operand.vmem [shape: f32[3,1,32], index: 9, kind: input, shape index: {}]
  %s10 = inlined_call_operand.vmem [shape: f32[3,1,32], index: 10, kind: input, shape index: {}]
  %s11 = inlined_call_operand.vmem [shape: f32[3,1,32], index: 11, kind: input, shape index: {}]
  %s12 = inlined_call_operand.vmem [shape: bf16[3,32,128], index: 12, kind: input, shape index: {}]
  %s13 = inlined_call_operand.vmem [shape: f32[3,1,128], index: 13, kind: input, shape index: {}]
  %s14 = inlined_call_operand.vmem [shape: bf16[3,128,32], index: 14, kind: input, shape index: {}]
  %s15 = inlined_call_operand.vmem [shape: f32[3,1,32], index: 15, kind: input, shape index: {}]
  %s16 = inlined_call_operand.vmem [shape: f32[1,32], index: 16, kind: input, shape index: {}]
  %s17 = inlined_call_operand.vmem [shape: f32[1,32], index: 17, kind: input, shape index: {}]
  %s18 = inlined_call_operand.vmem [shape: bf16[32,32], index: 18, kind: input, shape index: {}]
  %s19 = inlined_call_operand.hbm [shape: f32[2,32], index: 19, kind: output, shape index: {}]
  %s20 = sld [smem:[#allocation0]]
  $region117: #{tpu_custom_call.1} parent=0
    _
  %s22 = ssub.s32 1, %s20
  %s23 = scalar_select 0, %s22, %s20
  %s25 = sshll.u32 %s0, 4
  %s26 = int_to_ptr.vmem [resolvable:$true] %s25
  %28 = dma.vmem_to_smem %s26, 16, [#allocation4], [#allocation3]
  %30 = dma.done [#allocation3], 16
  %31 = sfence
  $region1: #{tpu_custom_call.1} parent=0
    #allocation5 [shape = 'u8[1024]{0}', space=vmem, size = 0x400, scoped, tag = 'output window, operand 0, single buffered']
    #allocation6 [shape = 's32[2]{0}', space=sflag, size = 0x8, scoped, tag = 'scoped memory for tpu_custom_call.1']
    %32 = vsyncpa [#allocation6], 0
    loop: start=0, step=1, limit=5
    $region2: #{tpu_custom_call.1} parent=1 // loop_pre_header
      _
    $region3: #{tpu_custom_call.1} parent=1 // loop_header
      %s34 = sphi 0, %s38
      %p35 = scmp.ge.s32.totalorder %s34, 5
      %s42 = sphi 0, %s42
      %s44 = sphi 0, %s42
      %s45 = sphi 0, %s44
      %s59 = sphi 0, %s45
      %s63 = sphi 0, %s63
      %s65 = sphi 0, %s63
      %s66 = sphi 0, %s65
      %s80 = sphi 0, %s66
      %s96 = sphi 0, %s98
      %s99 = sphi 0, %s96
      %s100 = sphi 0, %s99
      %s116 = sphi 0, %s100
      %s122 = sphi 0, %s124
      %s125 = sphi 0, %s122
      %s126 = sphi 0, %s125
      %s142 = sphi 0, %s126
      %s148 = sphi 0, %s150
      %s151 = sphi 0, %s148
      %s152 = sphi 0, %s151
      %s168 = sphi 0, %s152
      %s174 = sphi 0, %s176
      %s177 = sphi 0, %s174
      %s178 = sphi 0, %s177
      %s194 = sphi 0, %s178
      %s200 = sphi 0, %s202
      %s203 = sphi 0, %s200
      %s204 = sphi 0, %s203
      %s220 = sphi 0, %s204
      %s226 = sphi 0, %s228
      %s229 = sphi 0, %s226
      %s230 = sphi 0, %s229
      %s246 = sphi 0, %s230
      %s252 = sphi 0, %s254
      %s255 = sphi 0, %s252
      %s256 = sphi 0, %s255
      %s272 = sphi 0, %s256
      %s278 = sphi 0, %s280
      %s281 = sphi 0, %s278
      %s282 = sphi 0, %s281
      %s298 = sphi 0, %s282
      %s304 = sphi 0, %s306
      %s307 = sphi 0, %s304
      %s308 = sphi 0, %s307
      %s324 = sphi 0, %s308
      %s330 = sphi 0, %s332
      %s333 = sphi 0, %s330
      %s334 = sphi 0, %s333
      %s350 = sphi 0, %s334
      %s356 = sphi 0, %s358
      %s359 = sphi 0, %s356
      %s360 = sphi 0, %s359
      %s376 = sphi 0, %s360
      %s382 = sphi 0, %s384
      %s385 = sphi 0, %s382
      %s386 = sphi 0, %s385
      %s402 = sphi 0, %s386
      %s408 = sphi 0, %s410
      %s411 = sphi 0, %s408
      %s412 = sphi 0, %s411
      %s428 = sphi 0, %s412
      %s432 = sphi 0, %s432
      %s434 = sphi 0, %s432
      %s435 = sphi 0, %s434
      %s449 = sphi 0, %s435
      %s453 = sphi 0, %s453
      %s455 = sphi 0, %s453
      %s456 = sphi 0, %s455
      %s470 = sphi 0, %s456
      %s474 = sphi 0, %s474
      %s476 = sphi 0, %s474
      %s477 = sphi 0, %s476
      %s491 = sphi 0, %s477
      %s495 = sphi 0, %s495
      %s497 = sphi 0, %s495
      %s498 = sphi 0, %s497
      %s512 = sphi 0, %s498
    $region4: #{tpu_custom_call.1} parent=1 // loop_header_branch
      %37 = sbr.rel (%p35) target = $region8
    $region5: #{tpu_custom_call.1} parent=1 // loop_body
      %s39 = ssub.s32 %s34, 1
      %s40 = ssub.s32 %s34, 2
      %s41 = sadd.s32 %s34, 1
      %s43 = sadd.s32 %s42, 1
      %p46 = scmp.eq.s32.totalorder %s34, 2
      %p47 = scmp.ne.s32.totalorder %s42, %s44
      %p48 = scmp.eq.s32.totalorder %s34, 0
      %p49 = por %p47, %p48
      %p50 = scmp.ne.s32.totalorder %s42, %s44
      %p51 = scmp.eq.s32.totalorder %s39, 2
      %p52 = por %p50, %p51
      %p53 = scmp.ne.s32.totalorder %s44, %s45
      %p54 = scmp.eq.s32.totalorder %s39, 0
      %p55 = por %p53, %p54
      %p56 = scmp.ne.s32.totalorder %s44, %s45
      %p57 = scmp.eq.s32.totalorder %s40, 2
      %p58 = por %p56, %p57
      %p60 = scmp.ne.s32.totalorder %s45, %s59
      %p61 = scmp.eq.s32.totalorder %s40, 0
      %p62 = por %p60, %p61
      %s64 = sadd.s32 %s63, 1
      %p67 = scmp.eq.s32.totalorder %s34, 2
      %p68 = scmp.ne.s32.totalorder %s63, %s65
      %p69 = scmp.eq.s32.totalorder %s34, 0
      %p70 = por %p68, %p69
      %p71 = scmp.ne.s32.totalorder %s63, %s65
      %p72 = scmp.eq.s32.totalorder %s39, 2
      %p73 = por %p71, %p72
      %p74 = scmp.ne.s32.totalorder %s65, %s66
      %p75 = scmp.eq.s32.totalorder %s39, 0
      %p76 = por %p74, %p75
      %p77 = scmp.ne.s32.totalorder %s65, %s66
      %p78 = scmp.eq.s32.totalorder %s40, 2
      %p79 = por %p77, %p78
      %p81 = scmp.ne.s32.totalorder %s66, %s80
      %p82 = scmp.eq.s32.totalorder %s40, 0
      %p83 = por %p81, %p82
      %s84 = ssub.s32 %s34, 1
      %p85 = scmp.gt.s32.totalorder %s84, 0
      %s86 = scalar_select %p85, %s84, 0
      %p87 = scmp.lt.s32.totalorder %s86, 1
      %s88 = scalar_select %p87, %s86, 1
      %s89 = ssub.s32 %s41, 1
      %p90 = scmp.gt.s32.totalorder %s89, 0
      %s91 = scalar_select %p90, %s89, 0
      %p92 = scmp.lt.s32.totalorder %s91, 1
      %s93 = scalar_select %p92, %s91, 1
      %s94 = ssub.s32 %s88, %s93
      %p95 = scmp.eq.s32.totalorder %s94, 0
      %s97 = sadd.s32 %s96, 1
      %s98 = scalar_select %p95, %s96, %s97
      %p101 = pneg %p95
      %p102 = scmp.eq.s32.totalorder %s34, 2
      %p103 = por %p101, %p102
      %p104 = scmp.ne.s32.totalorder %s96, %s99
      %p105 = scmp.eq.s32.totalorder %s34, 0
      %p106 = por %p104, %p105
      %p107 = scmp.ne.s32.totalorder %s96, %s99
      %p108 = scmp.eq.s32.totalorder %s39, 2
      %p109 = por %p107, %p108
      %p110 = scmp.ne.s32.totalorder %s99, %s100
      %p111 = scmp.eq.s32.totalorder %s39, 0
      %p112 = por %p110, %p111
      %p113 = scmp.ne.s32.totalorder %s99, %s100
      %p114 = scmp.eq.s32.totalorder %s40, 2
      %p115 = por %p113, %p114
      %p117 = scmp.ne.s32.totalorder %s100, %s116
      %p118 = scmp.eq.s32.totalorder %s40, 0
      %p119 = por %p117, %p118
      %s120 = ssub.s32 %s34, %s41
      %p121 = scmp.eq.s32.totalorder %s120, 0
      %s123 = sadd.s32 %s122, 1
      %s124 = scalar_select %p121, %s122, %s123
      %p127 = pneg %p121
      %p128 = scmp.eq.s32.totalorder %s34, 2
      %p129 = por %p127, %p128
      %p130 = scmp.ne.s32.totalorder %s122, %s125
      %p131 = scmp.eq.s32.totalorder %s34, 0
      %p132 = por %p130, %p131
      %p133 = scmp.ne.s32.totalorder %s122, %s125
      %p134 = scmp.eq.s32.totalorder %s39, 2
      %p135 = por %p133, %p134
      %p136 = scmp.ne.s32.totalorder %s125, %s126
      %p137 = scmp.eq.s32.totalorder %s39, 0
      %p138 = por %p136, %p137
      %p139 = scmp.ne.s32.totalorder %s125, %s126
      %p140 = scmp.eq.s32.totalorder %s40, 2
      %p141 = por %p139, %p140
      %p143 = scmp.ne.s32.totalorder %s126, %s142
      %p144 = scmp.eq.s32.totalorder %s40, 0
      %p145 = por %p143, %p144
      %s146 = ssub.s32 %s34, %s41
      %p147 = scmp.eq.s32.totalorder %s146, 0
      %s149 = sadd.s32 %s148, 1
      %s150 = scalar_select %p147, %s148, %s149
      %p153 = pneg %p147
      %p154 = scmp.eq.s32.totalorder %s34, 2
      %p155 = por %p153, %p154
      %p156 = scmp.ne.s32.totalorder %s148, %s151
      %p157 = scmp.eq.s32.totalorder %s34, 0
      %p158 = por %p156, %p157
      %p159 = scmp.ne.s32.totalorder %s148, %s151
      %p160 = scmp.eq.s32.totalorder %s39, 2
      %p161 = por %p159, %p160
      %p162 = scmp.ne.s32.totalorder %s151, %s152
      %p163 = scmp.eq.s32.totalorder %s39, 0
      %p164 = por %p162, %p163
      %p165 = scmp.ne.s32.totalorder %s151, %s152
      %p166 = scmp.eq.s32.totalorder %s40, 2
      %p167 = por %p165, %p166
      %p169 = scmp.ne.s32.totalorder %s152, %s168
      %p170 = scmp.eq.s32.totalorder %s40, 0
      %p171 = por %p169, %p170
      %s172 = ssub.s32 %s34, %s41
      %p173 = scmp.eq.s32.totalorder %s172, 0
      %s175 = sadd.s32 %s174, 1
      %s176 = scalar_select %p173, %s174, %s175
      %p179 = pneg %p173
      %p180 = scmp.eq.s32.totalorder %s34, 2
      %p181 = por %p179, %p180
      %p182 = scmp.ne.s32.totalorder %s174, %s177
      %p183 = scmp.eq.s32.totalorder %s34, 0
      %p184 = por %p182, %p183
      %p185 = scmp.ne.s32.totalorder %s174, %s177
      %p186 = scmp.eq.s32.totalorder %s39, 2
      %p187 = por %p185, %p186
      %p188 = scmp.ne.s32.totalorder %s177, %s178
      %p189 = scmp.eq.s32.totalorder %s39, 0
      %p190 = por %p188, %p189
      %p191 = scmp.ne.s32.totalorder %s177, %s178
      %p192 = scmp.eq.s32.totalorder %s40, 2
      %p193 = por %p191, %p192
      %p195 = scmp.ne.s32.totalorder %s178, %s194
      %p196 = scmp.eq.s32.totalorder %s40, 0
      %p197 = por %p195, %p196
      %s198 = ssub.s32 %s34, %s41
      %p199 = scmp.eq.s32.totalorder %s198, 0
      %s201 = sadd.s32 %s200, 1
      %s202 = scalar_select %p199, %s200, %s201
      %p205 = pneg %p199
      %p206 = scmp.eq.s32.totalorder %s34, 2
      %p207 = por %p205, %p206
      %p208 = scmp.ne.s32.totalorder %s200, %s203
      %p209 = scmp.eq.s32.totalorder %s34, 0
      %p210 = por %p208, %p209
      %p211 = scmp.ne.s32.totalorder %s200, %s203
      %p212 = scmp.eq.s32.totalorder %s39, 2
      %p213 = por %p211, %p212
      %p214 = scmp.ne.s32.totalorder %s203, %s204
      %p215 = scmp.eq.s32.totalorder %s39, 0
      %p216 = por %p214, %p215
      %p217 = scmp.ne.s32.totalorder %s203, %s204
      %p218 = scmp.eq.s32.totalorder %s40, 2
      %p219 = por %p217, %p218
      %p221 = scmp.ne.s32.totalorder %s204, %s220
      %p222 = scmp.eq.s32.totalorder %s40, 0
      %p223 = por %p221, %p222
      %s224 = ssub.s32 %s34, %s41
      %p225 = scmp.eq.s32.totalorder %s224, 0
      %s227 = sadd.s32 %s226, 1
      %s228 = scalar_select %p225, %s226, %s227
      %p231 = pneg %p225
      %p232 = scmp.eq.s32.totalorder %s34, 2
      %p233 = por %p231, %p232
      %p234 = scmp.ne.s32.totalorder %s226, %s229
      %p235 = scmp.eq.s32.totalorder %s34, 0
      %p236 = por %p234, %p235
      %p237 = scmp.ne.s32.totalorder %s226, %s229
      %p238 = scmp.eq.s32.totalorder %s39, 2
      %p239 = por %p237, %p238
      %p240 = scmp.ne.s32.totalorder %s229, %s230
      %p241 = scmp.eq.s32.totalorder %s39, 0
      %p242 = por %p240, %p241
      %p243 = scmp.ne.s32.totalorder %s229, %s230
      %p244 = scmp.eq.s32.totalorder %s40, 2
      %p245 = por %p243, %p244
      %p247 = scmp.ne.s32.totalorder %s230, %s246
      %p248 = scmp.eq.s32.totalorder %s40, 0
      %p249 = por %p247, %p248
      %s250 = ssub.s32 %s34, %s41
      %p251 = scmp.eq.s32.totalorder %s250, 0
      %s253 = sadd.s32 %s252, 1
      %s254 = scalar_select %p251, %s252, %s253
      %p257 = pneg %p251
      %p258 = scmp.eq.s32.totalorder %s34, 2
      %p259 = por %p257, %p258
      %p260 = scmp.ne.s32.totalorder %s252, %s255
      %p261 = scmp.eq.s32.totalorder %s34, 0
      %p262 = por %p260, %p261
      %p263 = scmp.ne.s32.totalorder %s252, %s255
      %p264 = scmp.eq.s32.totalorder %s39, 2
      %p265 = por %p263, %p264
      %p266 = scmp.ne.s32.totalorder %s255, %s256
      %p267 = scmp.eq.s32.totalorder %s39, 0
      %p268 = por %p266, %p267
      %p269 = scmp.ne.s32.totalorder %s255, %s256
      %p270 = scmp.eq.s32.totalorder %s40, 2
      %p271 = por %p269, %p270
      %p273 = scmp.ne.s32.totalorder %s256, %s272
      %p274 = scmp.eq.s32.totalorder %s40, 0
      %p275 = por %p273, %p274
      %s276 = ssub.s32 %s34, %s41
      %p277 = scmp.eq.s32.totalorder %s276, 0
      %s279 = sadd.s32 %s278, 1
      %s280 = scalar_select %p277, %s278, %s279
      %p283 = pneg %p277
      %p284 = scmp.eq.s32.totalorder %s34, 2
      %p285 = por %p283, %p284
      %p286 = scmp.ne.s32.totalorder %s278, %s281
      %p287 = scmp.eq.s32.totalorder %s34, 0
      %p288 = por %p286, %p287
      %p289 = scmp.ne.s32.totalorder %s278, %s281
      %p290 = scmp.eq.s32.totalorder %s39, 2
      %p291 = por %p289, %p290
      %p292 = scmp.ne.s32.totalorder %s281, %s282
      %p293 = scmp.eq.s32.totalorder %s39, 0
      %p294 = por %p292, %p293
      %p295 = scmp.ne.s32.totalorder %s281, %s282
      %p296 = scmp.eq.s32.totalorder %s40, 2
      %p297 = por %p295, %p296
      %p299 = scmp.ne.s32.totalorder %s282, %s298
      %p300 = scmp.eq.s32.totalorder %s40, 0
      %p301 = por %p299, %p300
      %s302 = ssub.s32 %s34, %s41
      %p303 = scmp.eq.s32.totalorder %s302, 0
      %s305 = sadd.s32 %s304, 1
      %s306 = scalar_select %p303, %s304, %s305
      %p309 = pneg %p303
      %p310 = scmp.eq.s32.totalorder %s34, 2
      %p311 = por %p309, %p310
      %p312 = scmp.ne.s32.totalorder %s304, %s307
      %p313 = scmp.eq.s32.totalorder %s34, 0
      %p314 = por %p312, %p313
      %p315 = scmp.ne.s32.totalorder %s304, %s307
      %p316 = scmp.eq.s32.totalorder %s39, 2
      %p317 = por %p315, %p316
      %p318 = scmp.ne.s32.totalorder %s307, %s308
      %p319 = scmp.eq.s32.totalorder %s39, 0
      %p320 = por %p318, %p319
      %p321 = scmp.ne.s32.totalorder %s307, %s308
      %p322 = scmp.eq.s32.totalorder %s40, 2
      %p323 = por %p321, %p322
      %p325 = scmp.ne.s32.totalorder %s308, %s324
      %p326 = scmp.eq.s32.totalorder %s40, 0
      %p327 = por %p325, %p326
      %s328 = ssub.s32 %s34, %s41
      %p329 = scmp.eq.s32.totalorder %s328, 0
      %s331 = sadd.s32 %s330, 1
      %s332 = scalar_select %p329, %s330, %s331
      %p335 = pneg %p329
      %p336 = scmp.eq.s32.totalorder %s34, 2
      %p337 = por %p335, %p336
      %p338 = scmp.ne.s32.totalorder %s330, %s333
      %p339 = scmp.eq.s32.totalorder %s34, 0
      %p340 = por %p338, %p339
      %p341 = scmp.ne.s32.totalorder %s330, %s333
      %p342 = scmp.eq.s32.totalorder %s39, 2
      %p343 = por %p341, %p342
      %p344 = scmp.ne.s32.totalorder %s333, %s334
      %p345 = scmp.eq.s32.totalorder %s39, 0
      %p346 = por %p344, %p345
      %p347 = scmp.ne.s32.totalorder %s333, %s334
      %p348 = scmp.eq.s32.totalorder %s40, 2
      %p349 = por %p347, %p348
      %p351 = scmp.ne.s32.totalorder %s334, %s350
      %p352 = scmp.eq.s32.totalorder %s40, 0
      %p353 = por %p351, %p352
      %s354 = ssub.s32 %s34, %s41
      %p355 = scmp.eq.s32.totalorder %s354, 0
      %s357 = sadd.s32 %s356, 1
      %s358 = scalar_select %p355, %s356, %s357
      %p361 = pneg %p355
      %p362 = scmp.eq.s32.totalorder %s34, 2
      %p363 = por %p361, %p362
      %p364 = scmp.ne.s32.totalorder %s356, %s359
      %p365 = scmp.eq.s32.totalorder %s34, 0
      %p366 = por %p364, %p365
      %p367 = scmp.ne.s32.totalorder %s356, %s359
      %p368 = scmp.eq.s32.totalorder %s39, 2
      %p369 = por %p367, %p368
      %p370 = scmp.ne.s32.totalorder %s359, %s360
      %p371 = scmp.eq.s32.totalorder %s39, 0
      %p372 = por %p370, %p371
      %p373 = scmp.ne.s32.totalorder %s359, %s360
      %p374 = scmp.eq.s32.totalorder %s40, 2
      %p375 = por %p373, %p374
      %p377 = scmp.ne.s32.totalorder %s360, %s376
      %p378 = scmp.eq.s32.totalorder %s40, 0
      %p379 = por %p377, %p378
      %s380 = ssub.s32 %s34, %s41
      %p381 = scmp.eq.s32.totalorder %s380, 0
      %s383 = sadd.s32 %s382, 1
      %s384 = scalar_select %p381, %s382, %s383
      %p387 = pneg %p381
      %p388 = scmp.eq.s32.totalorder %s34, 2
      %p389 = por %p387, %p388
      %p390 = scmp.ne.s32.totalorder %s382, %s385
      %p391 = scmp.eq.s32.totalorder %s34, 0
      %p392 = por %p390, %p391
      %p393 = scmp.ne.s32.totalorder %s382, %s385
      %p394 = scmp.eq.s32.totalorder %s39, 2
      %p395 = por %p393, %p394
      %p396 = scmp.ne.s32.totalorder %s385, %s386
      %p397 = scmp.eq.s32.totalorder %s39, 0
      %p398 = por %p396, %p397
      %p399 = scmp.ne.s32.totalorder %s385, %s386
      %p400 = scmp.eq.s32.totalorder %s40, 2
      %p401 = por %p399, %p400
      %p403 = scmp.ne.s32.totalorder %s386, %s402
      %p404 = scmp.eq.s32.totalorder %s40, 0
      %p405 = por %p403, %p404
      %s406 = ssub.s32 %s34, %s41
      %p407 = scmp.eq.s32.totalorder %s406, 0
      %s409 = sadd.s32 %s408, 1
      %s410 = scalar_select %p407, %s408, %s409
      %p413 = pneg %p407
      %p414 = scmp.eq.s32.totalorder %s34, 2
      %p415 = por %p413, %p414
      %p416 = scmp.ne.s32.totalorder %s408, %s411
      %p417 = scmp.eq.s32.totalorder %s34, 0
      %p418 = por %p416, %p417
      %p419 = scmp.ne.s32.totalorder %s408, %s411
      %p420 = scmp.eq.s32.totalorder %s39, 2
      %p421 = por %p419, %p420
      %p422 = scmp.ne.s32.totalorder %s411, %s412
      %p423 = scmp.eq.s32.totalorder %s39, 0
      %p424 = por %p422, %p423
      %p425 = scmp.ne.s32.totalorder %s411, %s412
      %p426 = scmp.eq.s32.totalorder %s40, 2
      %p427 = por %p425, %p426
      %p429 = scmp.ne.s32.totalorder %s412, %s428
      %p430 = scmp.eq.s32.totalorder %s40, 0
      %p431 = por %p429, %p430
      %s433 = sadd.s32 %s432, 1
      %p436 = scmp.eq.s32.totalorder %s34, 2
      %p437 = scmp.ne.s32.totalorder %s432, %s434
      %p438 = scmp.eq.s32.totalorder %s34, 0
      %p439 = por %p437, %p438
      %p440 = scmp.ne.s32.totalorder %s432, %s434
      %p441 = scmp.eq.s32.totalorder %s39, 2
      %p442 = por %p440, %p441
      %p443 = scmp.ne.s32.totalorder %s434, %s435
      %p444 = scmp.eq.s32.totalorder %s39, 0
      %p445 = por %p443, %p444
      %p446 = scmp.ne.s32.totalorder %s434, %s435
      %p447 = scmp.eq.s32.totalorder %s40, 2
      %p448 = por %p446, %p447
      %p450 = scmp.ne.s32.totalorder %s435, %s449
      %p451 = scmp.eq.s32.totalorder %s40, 0
      %p452 = por %p450, %p451
      %s454 = sadd.s32 %s453, 1
      %p457 = scmp.eq.s32.totalorder %s34, 2
      %p458 = scmp.ne.s32.totalorder %s453, %s455
      %p459 = scmp.eq.s32.totalorder %s34, 0
      %p460 = por %p458, %p459
      %p461 = scmp.ne.s32.totalorder %s453, %s455
      %p462 = scmp.eq.s32.totalorder %s39, 2
      %p463 = por %p461, %p462
      %p464 = scmp.ne.s32.totalorder %s455, %s456
      %p465 = scmp.eq.s32.totalorder %s39, 0
      %p466 = por %p464, %p465
      %p467 = scmp.ne.s32.totalorder %s455, %s456
      %p468 = scmp.eq.s32.totalorder %s40, 2
      %p469 = por %p467, %p468
      %p471 = scmp.ne.s32.totalorder %s456, %s470
      %p472 = scmp.eq.s32.totalorder %s40, 0
      %p473 = por %p471, %p472
      %s475 = sadd.s32 %s474, 1
      %p478 = scmp.eq.s32.totalorder %s34, 2
      %p479 = scmp.ne.s32.totalorder %s474, %s476
      %p480 = scmp.eq.s32.totalorder %s34, 0
      %p481 = por %p479, %p480
      %p482 = scmp.ne.s32.totalorder %s474, %s476
      %p483 = scmp.eq.s32.totalorder %s39, 2
      %p484 = por %p482, %p483
      %p485 = scmp.ne.s32.totalorder %s476, %s477
      %p486 = scmp.eq.s32.totalorder %s39, 0
      %p487 = por %p485, %p486
      %p488 = scmp.ne.s32.totalorder %s476, %s477
      %p489 = scmp.eq.s32.totalorder %s40, 2
      %p490 = por %p488, %p489
      %p492 = scmp.ne.s32.totalorder %s477, %s491
      %p493 = scmp.eq.s32.totalorder %s40, 0
      %p494 = por %p492, %p493
      %s496 = sadd.s32 %s495, 1
      %p499 = scmp.eq.s32.totalorder %s34, 2
      %p500 = scmp.ne.s32.totalorder %s495, %s497
      %p501 = scmp.eq.s32.totalorder %s34, 0
      %p502 = por %p500, %p501
      %p503 = scmp.ne.s32.totalorder %s495, %s497
      %p504 = scmp.eq.s32.totalorder %s39, 2
      %p505 = por %p503, %p504
      %p506 = scmp.ne.s32.totalorder %s497, %s498
      %p507 = scmp.eq.s32.totalorder %s39, 0
      %p508 = por %p506, %p507
      %p509 = scmp.ne.s32.totalorder %s497, %s498
      %p510 = scmp.eq.s32.totalorder %s40, 2
      %p511 = por %p509, %p510
      %p513 = scmp.ne.s32.totalorder %s498, %s512
      %p514 = scmp.eq.s32.totalorder %s40, 0
      %p515 = por %p513, %p514
      %p516 = scmp.le.s32.totalorder 1, %s34
      %p517 = scmp.lt.s32.totalorder %s34, 4
      %p518 = pnand %p516, %p517
      %p519 = pneg %p518
      // Predicated region
      $region9: #{tpu_custom_call.1} parent=5 // pred_check
        _
      $region10: #{tpu_custom_call.1} parent=5 // pred_check_branch
        %521 = sbr.rel (%p518) target = $region12
      $region11: #{tpu_custom_call.1} parent=5 // pred_region
        %s522 = ssub.s32 %s34, 1
        // Predicated region
        $region13: #{tpu_custom_call.1} parent=11 // pred_check
          %p523 = pneg %p55
        $region14: #{tpu_custom_call.1} parent=11 // pred_check_branch
          %525 = sbr.rel (%p523) target = $region16
        $region15: #{tpu_custom_call.1} parent=11 // pred_region
          _
        $region16: #{tpu_custom_call.1} parent=11 // pred_fallthru
          _
        // Predicated region
        $region17: #{tpu_custom_call.1} parent=11 // pred_check
          %p526 = pneg %p76
        $region18: #{tpu_custom_call.1} parent=11 // pred_check_branch
          %528 = sbr.rel (%p526) target = $region20
        $region19: #{tpu_custom_call.1} parent=11 // pred_region
          _
        $region20: #{tpu_custom_call.1} parent=11 // pred_fallthru
          _
        // Predicated region
        $region21: #{tpu_custom_call.1} parent=11 // pred_check
          %p529 = pneg %p445
        $region22: #{tpu_custom_call.1} parent=11 // pred_check_branch
          %531 = sbr.rel (%p529) target = $region24
        $region23: #{tpu_custom_call.1} parent=11 // pred_region
          _
        $region24: #{tpu_custom_call.1} parent=11 // pred_fallthru
          _
        // Predicated region
        $region25: #{tpu_custom_call.1} parent=11 // pred_check
          %p532 = pneg %p466
        $region26: #{tpu_custom_call.1} parent=11 // pred_check_branch
          %534 = sbr.rel (%p532) target = $region28
        $region27: #{tpu_custom_call.1} parent=11 // pred_region
          _
        $region28: #{tpu_custom_call.1} parent=11 // pred_fallthru
          _
        // Predicated region
        $region29: #{tpu_custom_call.1} parent=11 // pred_check
          %p535 = pneg %p487
        $region30: #{tpu_custom_call.1} parent=11 // pred_check_branch
          %537 = sbr.rel (%p535) target = $region32
        $region31: #{tpu_custom_call.1} parent=11 // pred_region
          _
        $region32: #{tpu_custom_call.1} parent=11 // pred_fallthru
          _
      $region12: #{tpu_custom_call.1} parent=5 // pred_fallthru
        _
      %p538 = scmp.lt.s32.totalorder %s34, 3
      // Predicated region
      $region33: #{tpu_custom_call.1} parent=5 // pred_check
        %p539 = pneg %p538
      $region34: #{tpu_custom_call.1} parent=5 // pred_check_branch
        %541 = sbr.rel (%p539) target = $region36
      $region35: #{tpu_custom_call.1} parent=5 // pred_region
        // Predicated region
        $region37: #{tpu_custom_call.1} parent=35 // pred_check
          %p542 = pneg %p106
        $region38: #{tpu_custom_call.1} parent=35 // pred_check_branch
          %544 = sbr.rel (%p542) target = $region40
        $region39: #{tpu_custom_call.1} parent=35 // pred_region
          %s545 = ssub.s32 %s34, 1
          %p546 = scmp.gt.s32.totalorder %s545, 0
          %s547 = scalar_select %p546, %s545, 0
          %p548 = scmp.lt.s32.totalorder %s547, 1
          %s549 = scalar_select %p548, %s547, 1
          %p550 = scmp.lt.s32.totalorder %s549, 1
          %s551 = scalar_select %p550, %s549, 1
          %s552 = smul.addr %s551, 2
          %s553 = scalar_lea.vmem %s3, %s552
          %s554 = ssub.s32 %s34, 1
          %p555 = scmp.gt.s32.totalorder %s554, 0
          %s556 = scalar_select %p555, %s554, 0
          %p557 = scmp.lt.s32.totalorder %s556, 1
          %s558 = scalar_select %p557, %s556, 1
        $region40: #{tpu_custom_call.1} parent=35 // pred_fallthru
          _
        // Predicated region
        $region41: #{tpu_custom_call.1} parent=35 // pred_check
          %p559 = pneg %p132
        $region42: #{tpu_custom_call.1} parent=35 // pred_check_branch
          %561 = sbr.rel (%p559) target = $region44
        $region43: #{tpu_custom_call.1} parent=35 // pred_region
          %p562 = scmp.lt.s32.totalorder %s34, 2
          %s563 = scalar_select %p562, %s34, 2
          %s564 = scalar_lea.vmem %s4, %s563
        $region44: #{tpu_custom_call.1} parent=35 // pred_fallthru
          _
        // Predicated region
        $region45: #{tpu_custom_call.1} parent=35 // pred_check
          %p565 = pneg %p158
        $region46: #{tpu_custom_call.1} parent=35 // pred_check_branch
          %567 = sbr.rel (%p565) target = $region48
        $region47: #{tpu_custom_call.1} parent=35 // pred_region
          %p568 = scmp.lt.s32.totalorder %s34, 2
          %s569 = scalar_select %p568, %s34, 2
          %s570 = scalar_lea.vmem %s5, %s569
        $region48: #{tpu_custom_call.1} parent=35 // pred_fallthru
          _
        // Predicated region
        $region49: #{tpu_custom_call.1} parent=35 // pred_check
          %p571 = pneg %p184
        $region50: #{tpu_custom_call.1} parent=35 // pred_check_branch
          %573 = sbr.rel (%p571) target = $region52
        $region51: #{tpu_custom_call.1} parent=35 // pred_region
          %p574 = scmp.lt.s32.totalorder %s34, 2
          %s575 = scalar_select %p574, %s34, 2
          %s576 = smul.addr %s575, 4
          %s577 = smul.addr %s576, 4
          %s578 = scalar_lea.vmem %s6, %s577
        $region52: #{tpu_custom_call.1} parent=35 // pred_fallthru
          _
        // Predicated region
        $region53: #{tpu_custom_call.1} parent=35 // pred_check
          %p579 = pneg %p210
        $region54: #{tpu_custom_call.1} parent=35 // pred_check_branch
          %581 = sbr.rel (%p579) target = $region56
        $region55: #{tpu_custom_call.1} parent=35 // pred_region
          %p582 = scmp.lt.s32.totalorder %s34, 2
          %s583 = scalar_select %p582, %s34, 2
          %s584 = scalar_lea.vmem %s7, %s583
        $region56: #{tpu_custom_call.1} parent=35 // pred_fallthru
          _
        // Predicated region
        $region57: #{tpu_custom_call.1} parent=35 // pred_check
          %p585 = pneg %p236
        $region58: #{tpu_custom_call.1} parent=35 // pred_check_branch
          %587 = sbr.rel (%p585) target = $region60
        $region59: #{tpu_custom_call.1} parent=35 // pred_region
          %p588 = scmp.lt.s32.totalorder %s34, 2
          %s589 = scalar_select %p588, %s34, 2
          %s590 = smul.addr %s589, 4
          %s591 = smul.addr %s590, 4
          %s592 = scalar_lea.vmem %s8, %s591
        $region60: #{tpu_custom_call.1} parent=35 // pred_fallthru
          _
        // Predicated region
        $region61: #{tpu_custom_call.1} parent=35 // pred_check
          %p593 = pneg %p262
        $region62: #{tpu_custom_call.1} parent=35 // pred_check_branch
          %595 = sbr.rel (%p593) target = $region64
        $region63: #{tpu_custom_call.1} parent=35 // pred_region
          %p596 = scmp.lt.s32.totalorder %s34, 2
          %s597 = scalar_select %p596, %s34, 2
          %s598 = scalar_lea.vmem %s9, %s597
        $region64: #{tpu_custom_call.1} parent=35 // pred_fallthru
          _
        // Predicated region
        $region65: #{tpu_custom_call.1} parent=35 // pred_check
          %p599 = pneg %p288
        $region66: #{tpu_custom_call.1} parent=35 // pred_check_branch
          %601 = sbr.rel (%p599) target = $region68
        $region67: #{tpu_custom_call.1} parent=35 // pred_region
          %p602 = scmp.lt.s32.totalorder %s34, 2
          %s603 = scalar_select %p602, %s34, 2
          %s604 = scalar_lea.vmem %s10, %s603
        $region68: #{tpu_custom_call.1} parent=35 // pred_fallthru
          _
        // Predicated region
        $region69: #{tpu_custom_call.1} parent=35 // pred_check
          %p605 = pneg %p314
        $region70: #{tpu_custom_call.1} parent=35 // pred_check_branch
          %607 = sbr.rel (%p605) target = $region72
        $region71: #{tpu_custom_call.1} parent=35 // pred_region
          %p608 = scmp.lt.s32.totalorder %s34, 2
          %s609 = scalar_select %p608, %s34, 2
          %s610 = scalar_lea.vmem %s11, %s609
        $region72: #{tpu_custom_call.1} parent=35 // pred_fallthru
          _
        // Predicated region
        $region73: #{tpu_custom_call.1} parent=35 // pred_check
          %p611 = pneg %p340
        $region74: #{tpu_custom_call.1} parent=35 // pred_check_branch
          %613 = sbr.rel (%p611) target = $region76
        $region75: #{tpu_custom_call.1} parent=35 // pred_region
          %p614 = scmp.lt.s32.totalorder %s34, 2
          %s615 = scalar_select %p614, %s34, 2
          %s616 = smul.addr %s615, 4
          %s617 = smul.addr %s616, 4
          %s618 = scalar_lea.vmem %s12, %s617
        $region76: #{tpu_custom_call.1} parent=35 // pred_fallthru
          _
        // Predicated region
        $region77: #{tpu_custom_call.1} parent=35 // pred_check
          %p619 = pneg %p366
        $region78: #{tpu_custom_call.1} parent=35 // pred_check_branch
          %621 = sbr.rel (%p619) target = $region80
        $region79: #{tpu_custom_call.1} parent=35 // pred_region
          %p622 = scmp.lt.s32.totalorder %s34, 2
          %s623 = scalar_select %p622, %s34, 2
          %s624 = scalar_lea.vmem %s13, %s623
        $region80: #{tpu_custom_call.1} parent=35 // pred_fallthru
          _
        // Predicated region
        $region81: #{tpu_custom_call.1} parent=35 // pred_check
          %p625 = pneg %p392
        $region82: #{tpu_custom_call.1} parent=35 // pred_check_branch
          %627 = sbr.rel (%p625) target = $region84
        $region83: #{tpu_custom_call.1} parent=35 // pred_region
          %p628 = scmp.lt.s32.totalorder %s34, 2
          %s629 = scalar_select %p628, %s34, 2
          %s630 = smul.addr %s629, 16
          %s631 = smul.addr %s630, 4
          %s632 = scalar_lea.vmem %s14, %s631
        $region84: #{tpu_custom_call.1} parent=35 // pred_fallthru
          _
        // Predicated region
        $region85: #{tpu_custom_call.1} parent=35 // pred_check
          %p633 = pneg %p418
        $region86: #{tpu_custom_call.1} parent=35 // pred_check_branch
          %635 = sbr.rel (%p633) target = $region88
        $region87: #{tpu_custom_call.1} parent=35 // pred_region
          %p636 = scmp.lt.s32.totalorder %s34, 2
          %s637 = scalar_select %p636, %s34, 2
          %s638 = scalar_lea.vmem %s15, %s637
        $region88: #{tpu_custom_call.1} parent=35 // pred_fallthru
          _
      $region36: #{tpu_custom_call.1} parent=5 // pred_fallthru
        _
      %p639 = scmp.le.s32.totalorder 1, %s34
      %p640 = scmp.lt.s32.totalorder %s34, 4
      %p641 = pnand %p639, %p640
      %p642 = pneg %p641
      // Predicated region
      $region89: #{tpu_custom_call.1} parent=5 // pred_check
        _
      $region90: #{tpu_custom_call.1} parent=5 // pred_check_branch
        %644 = sbr.rel (%p641) target = $region92
      $region91: #{tpu_custom_call.1} parent=5 // pred_region
        %s645 = ssub.s32 %s34, 1
        %p646 = pneg %p55
        %p647 = pneg %p52
        %p648 = pneg %p76
        %p649 = pneg %p73
        %s650 = ssub.s32 %s39, 1
        %p651 = scmp.gt.s32.totalorder %s650, 0
        %s652 = scalar_select %p651, %s650, 0
        %p653 = scmp.lt.s32.totalorder %s652, 1
        %s654 = scalar_select %p653, %s652, 1
        %p655 = scmp.lt.s32.totalorder %s654, 1
        %s656 = scalar_select %p655, %s654, 1
        %s657 = smul.addr %s656, 2
        %s658 = scalar_lea.vmem %s3, %s657
        %p659 = pneg %p112
        %p660 = pneg %p109
        %p661 = scmp.lt.s32.totalorder %s39, 2
        %s662 = scalar_select %p661, %s39, 2
        %s663 = scalar_lea.vmem %s4, %s662
        %p664 = pneg %p138
        %p665 = pneg %p135
        %p666 = scmp.lt.s32.totalorder %s39, 2
        %s667 = scalar_select %p666, %s39, 2
        %s668 = scalar_lea.vmem %s5, %s667
        %p669 = pneg %p164
        %p670 = pneg %p161
        %p671 = scmp.lt.s32.totalorder %s39, 2
        %s672 = scalar_select %p671, %s39, 2
        %s673 = smul.addr %s672, 4
        %s674 = smul.addr %s673, 4
        %s675 = scalar_lea.vmem %s6, %s674
        %p676 = pneg %p190
        %p677 = pneg %p187
        %p678 = scmp.lt.s32.totalorder %s39, 2
        %s679 = scalar_select %p678, %s39, 2
        %s680 = scalar_lea.vmem %s7, %s679
        %p681 = pneg %p216
        %p682 = pneg %p213
        %p683 = scmp.lt.s32.totalorder %s39, 2
        %s684 = scalar_select %p683, %s39, 2
        %s685 = smul.addr %s684, 4
        %s686 = smul.addr %s685, 4
        %s687 = scalar_lea.vmem %s8, %s686
        %p688 = pneg %p242
        %p689 = pneg %p239
        %p690 = scmp.lt.s32.totalorder %s39, 2
        %s691 = scalar_select %p690, %s39, 2
        %s692 = scalar_lea.vmem %s9, %s691
        %p693 = pneg %p268
        %p694 = pneg %p265
        %p695 = scmp.lt.s32.totalorder %s39, 2
        %s696 = scalar_select %p695, %s39, 2
        %s697 = scalar_lea.vmem %s10, %s696
        %p698 = pneg %p294
        %p699 = pneg %p291
        %p700 = scmp.lt.s32.totalorder %s39, 2
        %s701 = scalar_select %p700, %s39, 2
        %s702 = scalar_lea.vmem %s11, %s701
        %p703 = pneg %p320
        %p704 = pneg %p317
        %p705 = scmp.lt.s32.totalorder %s39, 2
        %s706 = scalar_select %p705, %s39, 2
        %s707 = smul.addr %s706, 4
        %s708 = smul.addr %s707, 4
        %s709 = scalar_lea.vmem %s12, %s708
        %p710 = pneg %p346
        %p711 = pneg %p343
        %p712 = scmp.lt.s32.totalorder %s39, 2
        %s713 = scalar_select %p712, %s39, 2
        %s714 = scalar_lea.vmem %s13, %s713
        %p715 = pneg %p372
        %p716 = pneg %p369
        %p717 = scmp.lt.s32.totalorder %s39, 2
        %s718 = scalar_select %p717, %s39, 2
        %s719 = smul.addr %s718, 16
        %s720 = smul.addr %s719, 4
        %s721 = scalar_lea.vmem %s14, %s720
        %p722 = pneg %p398
        %p723 = pneg %p395
        %p724 = scmp.lt.s32.totalorder %s39, 2
        %s725 = scalar_select %p724, %s39, 2
        %s726 = scalar_lea.vmem %s15, %s725
        %p727 = pneg %p424
        %p728 = pneg %p421
        %p729 = pneg %p445
        %p730 = pneg %p442
        %p731 = pneg %p466
        %p732 = pneg %p463
        %p733 = pneg %p487
        %p734 = pneg %p484
        %p735 = pneg %p508
        %p736 = pneg %p505
        %s737 = ssub.s32 %s39, 1
        %p738 = scmp.gt.s32.totalorder %s737, 0
        %s739 = scalar_select %p738, %s737, 0
        %p740 = scmp.lt.s32.totalorder %s739, 1
        %s741 = scalar_select %p740, %s739, 1
        %p742 = scmp.lt.s32.totalorder %s741, 1
        %s743 = scalar_select %p742, %s741, 1
        %s744 = smul.addr %s743, 2
        %s745 = scalar_lea.vmem %s3, %s744
        %s746 = ssub.s32 %s39, 1
        %p747 = scmp.gt.s32.totalorder %s746, 0
        %s748 = scalar_select %p747, %s746, 0
        %p749 = scmp.lt.s32.totalorder %s748, 1
        %s750 = scalar_select %p749, %s748, 1
        %p751 = scmp.lt.s32.totalorder %s39, 2
        %s752 = scalar_select %p751, %s39, 2
        %s753 = scalar_lea.vmem %s4, %s752
        %p754 = scmp.lt.s32.totalorder %s39, 2
        %s755 = scalar_select %p754, %s39, 2
        %s756 = scalar_lea.vmem %s5, %s755
        %p757 = scmp.lt.s32.totalorder %s39, 2
        %s758 = scalar_select %p757, %s39, 2
        %s759 = smul.addr %s758, 4
        %s760 = smul.addr %s759, 4
        %s761 = scalar_lea.vmem %s6, %s760
        %p762 = scmp.lt.s32.totalorder %s39, 2
        %s763 = scalar_select %p762, %s39, 2
        %s764 = scalar_lea.vmem %s7, %s763
        %p765 = scmp.lt.s32.totalorder %s39, 2
        %s766 = scalar_select %p765, %s39, 2
        %s767 = smul.addr %s766, 4
        %s768 = smul.addr %s767, 4
        %s769 = scalar_lea.vmem %s8, %s768
        %p770 = scmp.lt.s32.totalorder %s39, 2
        %s771 = scalar_select %p770, %s39, 2
        %s772 = scalar_lea.vmem %s9, %s771
        %p773 = scmp.lt.s32.totalorder %s39, 2
        %s774 = scalar_select %p773, %s39, 2
        %s775 = scalar_lea.vmem %s10, %s774
        %p776 = scmp.lt.s32.totalorder %s39, 2
        %s777 = scalar_select %p776, %s39, 2
        %s778 = scalar_lea.vmem %s11, %s777
        %p779 = scmp.lt.s32.totalorder %s39, 2
        %s780 = scalar_select %p779, %s39, 2
        %s781 = smul.addr %s780, 4
        %s782 = smul.addr %s781, 4
        %s783 = scalar_lea.vmem %s12, %s782
        %p784 = scmp.lt.s32.totalorder %s39, 2
        %s785 = scalar_select %p784, %s39, 2
        %s786 = scalar_lea.vmem %s13, %s785
        %p787 = scmp.lt.s32.totalorder %s39, 2
        %s788 = scalar_select %p787, %s39, 2
        %s789 = smul.addr %s788, 16
        %s790 = smul.addr %s789, 4
        %s791 = scalar_lea.vmem %s14, %s790
        %p792 = scmp.lt.s32.totalorder %s39, 2
        %s793 = scalar_select %p792, %s39, 2
        %s794 = scalar_lea.vmem %s15, %s793
        %p796 = scmp.eq.s32.totalorder %s39, 0
        // Predicated region
        $region93: #{tpu_custom_call.1} parent=91 // pred_check
          %p797 = pneg %p796
        $region94: #{tpu_custom_call.1} parent=91 // pred_check_branch
          %799 = sbr.rel (%p797) target = $region96
        $region95: #{tpu_custom_call.1} parent=91 // pred_region
          %v800 = vld [vmem:[%s1] sm:$0xff]
          %v801 = vld [vmem:[%s1 + $0x8] sm:$0xff]
          %v802 = vld [vmem:[%s2] sm:$0xff]
          %v803 = vadd.f32 %v800, %v802
          %v804 = vadd.f32 %v801, %v802
          %vm805 = vcmask 261120
          %806 = vst.msk [vmem:[#allocation2] sm:$0xff] %vm805, %v803
          %807 = vst.msk [vmem:[#allocation2 + $0x8] sm:$0xff] %vm805, %v804
        $region96: #{tpu_custom_call.1} parent=91 // pred_fallthru
          _
        %p808 = scmp.ge.s32.totalorder %s39, 1
        %p809 = scmp.le.s32.totalorder %s39, 2
        %p810 = pnand %p808, %p809
        %p811 = pneg %p810
        // Predicated region
        $region97: #{tpu_custom_call.1} parent=91 // pred_check
          _
        $region98: #{tpu_custom_call.1} parent=91 // pred_check_branch
          %813 = sbr.rel (%p810) target = $region100
        $region99: #{tpu_custom_call.1} parent=91 // pred_region
          %v814 = vld [vmem:[%s745] sm:$0x3]
          %v815 = vlaneseq
          %v816 = vshrl.u32 %v815, 7
          %v817 = vadd.s32 %v816, 8
          %vm818 = vcmp.lt.s32.totalorder %v816, 0
          %v819 = vsub.s32 0, %v816
          %v820 = vsel %vm818, %v819, %v816
          %v821 = vshrl.u32 %v820, 3
          %v822 = vand.u32 %v820, 7
          %v823 = vsub.s32 0, %v822
          %v824 = vsel %vm818, %v823, %v822
          %vm825 = vcmp.lt.s32.totalorder %v817, 0
          %v826 = vsub.s32 0, %v817
          %v827 = vsel %vm825, %v826, %v817
          %v828 = vshrl.u32 %v827, 3
          %v829 = vand.u32 %v827, 7
          %v830 = vsub.s32 0, %v829
          %v831 = vsel %vm825, %v830, %v829
          %vm832 = vcmp.ne.s32.totalorder %v824, 0
          %vm833 = vcmp.ne.s32.totalorder %v831, 0
          %vm834 = vcmp.lt.s32.totalorder %v824, 0
          %vm835 = vcmp.lt.s32.totalorder %v831, 0
          %vm836 = vmand %vm834, %vm832
          %vm837 = vmand %vm835, %vm833
          %v838 = vadd.s32 %v824, 8
          %v839 = vadd.s32 %v831, 8
          %v840 = vsel %vm836, %v838, %v824
          %v841 = vsel %vm837, %v839, %v831
          %v842 = vld [vmem:[#allocation2] sm:$0xff]
          %v843 = vld [vmem:[#allocation2 + $0x8] sm:$0xff]
          %vm844 = vcmp.eq.s32.totalorder %v840, 1
          %vm845 = vcmp.eq.s32.totalorder %v841, 1
          %v846 = vsel %vm844, 1, 0
          %v847 = vsel %vm845, 1, 0
          %vm848 = vcmp.eq.s32.totalorder %v846, 1
          %vm849 = vcmp.eq.s32.totalorder %v847, 1
          %v850 = vperm.slane %v814, 0
          %v851 = vsel %vm848, %v850, %v842
          %v852 = vsel %vm849, %v850, %v843
          %vm853 = vcmp.eq.s32.totalorder %v840, 2
          %vm854 = vcmp.eq.s32.totalorder %v841, 2
          %v855 = vsel %vm853, 1, 0
          %v856 = vsel %vm854, 1, 0
          %vm857 = vcmp.eq.s32.totalorder %v855, 1
          %vm858 = vcmp.eq.s32.totalorder %v856, 1
          %v859 = vperm.slane %v814, 1
          %v860 = vsel %vm857, %v859, %v851
          %v861 = vsel %vm858, %v859, %v852
          %vm862 = vcmask 261120
          %863 = vst.msk [vmem:[#allocation2] sm:$0xff] %vm862, %v860
          %864 = vst.msk [vmem:[#allocation2 + $0x8] sm:$0xff] %vm862, %v861
        $region100: #{tpu_custom_call.1} parent=91 // pred_fallthru
          _
        %v865 = vld [vmem:[#allocation2] sm:$0xff]
        %v866 = vld [vmem:[#allocation2 + $0x8] sm:$0xff]
        %v867 = vlaneseq
        %v868 = vshrl.u32 %v867, 7
        %v869 = vlaneseq
        %v870 = vand.u32 %v869, 127
        %vm871 = vcmp.gt.s32.totalorder %v870, %v868
        %v872 = vsel %vm871, -1e+30, 0.0
        %v873 = vld [vmem:[%s753] sm:$0x1]
        %v874 = vld [vmem:[%s756] sm:$0x1]
        %vm875 = vcmask 261120
        %v876 = vsel %vm875, %v865, 0.0
        %877 = vadd.xlane.f32.xlu0 %v876
        %v878 = vpop.xlane.xlu0 %877
        %v879 = vsel %vm875, %v866, 0.0
        %880 = vadd.xlane.f32.xlu0 %v879
        %v881 = vpop.xlane.xlu0 %880
        %v882 = vrcp.pop 32.0
        %v883 = vmul.f32 32.0, %v882
        %v884 = vsub.f32 1.0, %v883
        %v885 = vmul.f32 %v882, %v884
        %v886 = vadd.f32 %v882, %v885
        %vm887 = vweird.f32 %v882
        %v888 = vsel %vm887, %v882, %v886
        %v889 = vmul.f32 %v878, %v888
        %v890 = vmul.f32 %v881, %v888
        %v891 = vmul.f32 %v865, %v865
        %v892 = vmul.f32 %v866, %v866
        %v893 = vsel %vm875, %v891, 0.0
        %894 = vadd.xlane.f32.xlu0 %v893
        %v895 = vpop.xlane.xlu0 %894
        %v896 = vsel %vm875, %v892, 0.0
        %897 = vadd.xlane.f32.xlu0 %v896
        %v898 = vpop.xlane.xlu0 %897
        %v899 = vmul.f32 %v895, %v888
        %v900 = vmul.f32 %v898, %v888
        %v901 = vmul.f32 %v889, %v889
        %v902 = vmul.f32 %v890, %v890
        %v903 = vsub.f32 %v899, %v901
        %v904 = vsub.f32 %v900, %v902
        %v905 = vsub.f32 %v865, %v889
        %v906 = vsub.f32 %v866, %v890
        %v907 = vadd.f32 %v903, 1e-05
        %v908 = vadd.f32 %v904, 1e-05
        %v909 = vrsqrt.pop %v907
        %v910 = vmul.f32 %v909, %v907
        %v911 = vmul.f32 %v910, %v909
        %v912 = vmul.f32 0.5, %v911
        %v913 = vsub.f32 1.5, %v912
        %v914 = vmul.f32 %v909, %v913
        %vm915 = vweird.f32 %v907
        %vm916 = vweird.f32 %v909
        %vm917 = vmor %vm915, %vm916
        %v918 = vsel %vm917, %v909, %v914
        %v919 = vrsqrt.pop %v908
        %v920 = vmul.f32 %v919, %v908
        %v921 = vmul.f32 %v920, %v919
        %v922 = vmul.f32 0.5, %v921
        %v923 = vsub.f32 1.5, %v922
        %v924 = vmul.f32 %v919, %v923
        %vm925 = vweird.f32 %v908
        %vm926 = vweird.f32 %v919
        %vm927 = vmor %vm925, %vm926
        %v928 = vsel %vm927, %v919, %v924
        %v929 = vmul.f32 %v905, %v918
        %v930 = vmul.f32 %v906, %v928
        %v932 = vperm.slane %v873, 0
        %v934 = vmul.f32 %v929, %v932
        %v935 = vmul.f32 %v930, %v932
        %v937 = vperm.slane %v874, 0
        %v939 = vadd.f32 %v934, %v937
        %v940 = vadd.f32 %v935, %v937
        %v941 = vpack.c.bf16 %v940, %v939
        %v942 = vld [vmem:[%s761] sm:$0xf]
        %v943 = vld [vmem:[%s761 + $0x4] sm:$0xf]
        %v944 = vld [vmem:[%s761 + $0x8] sm:$0xf]
        %v945 = vld [vmem:[%s761 + $0xc] sm:$0xf]
        %v946 = vld [vmem:[%s764] sm:$0x1]
        %v948 = vperm.slane %v946, 0
        %v954 = vunpack.c.l.b16 %v942
        %v955 = vunpack.c.l.b16 %v943
        %v956 = vunpack.c.l.b16 %v944
        %v957 = vunpack.c.l.b16 %v945
        %v958 = vpack.c.b16 %v955, %v954
        %v959 = vpack.c.b16 %v957, %v956
        %v963 = vsel %vm875, %v941, 0
        %965 = vmatpush.bf16.msra.mxu0 0
        %966 = vmatpush.bf16.msra.mxu0 0
        %967 = vmatpush.bf16.msra.mxu0 0
        %968 = vmatpush.bf16.msra.mxu0 0
        %969 = vmatpush.bf16.msra.mxu0 0
        %970 = vmatpush.bf16.msra.mxu0 0
        %971 = vmatpush.bf16.msra.mxu0 %v959
        %972 = vmatpush.bf16.msra.mxu0 %v958
        %973 = vmatmul.bf16.gmra.mxu0 %v963
        %v974 = vpop.f32.mrf.mxu0
        %v975 = vadd.f32 %v948, %v974
        %v976 = vpop.f32.mrf.mxu0
        %v977 = vadd.f32 %v948, %v976
        %978 = vdwg.mxu0
        %981 = vrot.lane.b32.xlu0 %v975, 120
        %v982 = vpop.permute.xlu0 %981
        %983 = vrot.lane.b32.xlu0 %v977, 120
        %v984 = vpop.permute.xlu0 %983
        %987 = vrot.lane.b32.xlu0 %v975, 112
        %v988 = vpop.permute.xlu0 %987
        %989 = vrot.lane.b32.xlu0 %v977, 112
        %v990 = vpop.permute.xlu0 %989
        %993 = vrot.lane.b32.xlu0 %v975, 104
        %v994 = vpop.permute.xlu0 %993
        %995 = vrot.lane.b32.xlu0 %v977, 104
        %v996 = vpop.permute.xlu0 %995
        %v999 = vpack.c.bf16 %v975, %v975
        %v1000 = vpack.c.bf16 %v977, %v977
        %v1001 = vpack.c.bf16 %v982, %v982
        %v1002 = vpack.c.bf16 %v984, %v984
        %v1003 = vpack.c.bf16 %v988, %v988
        %v1004 = vpack.c.bf16 %v990, %v990
        %v1005 = vpack.c.bf16 %v994, %v994
        %v1006 = vpack.c.bf16 %v996, %v996
        %v1008 = vunpack.c.l.b16 %v999
        %v1009 = vpack.c.b16 %v1008, %v1008
        %1010 = vrot.lane.b32.xlu0 %v1009, 96
        %v1011 = vpop.permute.xlu0 %1010
        %vm1012 = vcmask 64512
        %v1014 = vsel %vm1012, %v999, 0
        %v1017 = vsel %vm1012, %v1011, 0
        %1019 = vmatpush.bf16.xpose.msra.mxu0 0
        %1020 = vmatpush.bf16.xpose.msra.mxu0 0
        %1021 = vmatpush.bf16.xpose.msra.mxu0 0
        %1022 = vmatpush.bf16.xpose.msra.mxu0 0
        %1023 = vmatpush.bf16.xpose.msra.mxu0 0
        %1024 = vmatpush.bf16.xpose.msra.mxu0 0
        %1025 = vmatpush.bf16.xpose.msra.mxu0 0
        %1026 = vmatpush.bf16.xpose.msra.mxu0 %v1017
        %1027 = vmatmul.bf16.gmra.mxu0 %v1014
        %v1028 = vpop.f32.mrf.mxu0
        %v1029 = vadd.f32 %v872, %v1028
        %v1030 = vpop.f32.mrf.mxu0
        %1031 = vdwg.mxu0
        %v1033 = vunpack.c.l.b16 %v1000
        %v1034 = vpack.c.b16 %v1033, %v1033
        %1035 = vrot.lane.b32.xlu0 %v1034, 96
        %v1036 = vpop.permute.xlu0 %1035
        %v1038 = vsel %vm1012, %v1000, 0
        %v1041 = vsel %vm1012, %v1036, 0
        %1043 = vmatpush.bf16.xpose.msra.mxu0 0
        %1044 = vmatpush.bf16.xpose.msra.mxu0 0
        %1045 = vmatpush.bf16.xpose.msra.mxu0 0
        %1046 = vmatpush.bf16.xpose.msra.mxu0 0
        %1047 = vmatpush.bf16.xpose.msra.mxu0 0
        %1048 = vmatpush.bf16.xpose.msra.mxu0 0
        %1049 = vmatpush.bf16.xpose.msra.mxu0 0
        %1050 = vmatpush.bf16.xpose.msra.mxu0 %v1041
        %1051 = vmatmul.bf16.gmra.mxu0 %v1038
        %v1052 = vpop.f32.mrf.mxu0
        %v1053 = vadd.f32 %v872, %v1052
        %v1054 = vpop.f32.mrf.mxu0
        %1055 = vdwg.mxu0
        %v1057 = vunpack.c.l.b16 %v1001
        %v1058 = vpack.c.b16 %v1057, %v1057
        %1059 = vrot.lane.b32.xlu0 %v1058, 96
        %v1060 = vpop.permute.xlu0 %1059
        %v1062 = vsel %vm1012, %v1001, 0
        %v1065 = vsel %vm1012, %v1060, 0
        %1067 = vmatpush.bf16.xpose.msra.mxu0 0
        %1068 = vmatpush.bf16.xpose.msra.mxu0 0
        %1069 = vmatpush.bf16.xpose.msra.mxu0 0
        %1070 = vmatpush.bf16.xpose.msra.mxu0 0
        %1071 = vmatpush.bf16.xpose.msra.mxu0 0
        %1072 = vmatpush.bf16.xpose.msra.mxu0 0
        %1073 = vmatpush.bf16.xpose.msra.mxu0 0
        %1074 = vmatpush.bf16.xpose.msra.mxu0 %v1065
        %1075 = vmatmul.bf16.gmra.mxu0 %v1062
        %v1076 = vpop.f32.mrf.mxu0
        %v1077 = vadd.f32 %v872, %v1076
        %v1078 = vpop.f32.mrf.mxu0
        %1079 = vdwg.mxu0
        %v1081 = vunpack.c.l.b16 %v1002
        %v1082 = vpack.c.b16 %v1081, %v1081
        %1083 = vrot.lane.b32.xlu0 %v1082, 96
        %v1084 = vpop.permute.xlu0 %1083
        %v1086 = vsel %vm1012, %v1002, 0
        %v1089 = vsel %vm1012, %v1084, 0
        %1091 = vmatpush.bf16.xpose.msra.mxu0 0
        %1092 = vmatpush.bf16.xpose.msra.mxu0 0
        %1093 = vmatpush.bf16.xpose.msra.mxu0 0
        %1094 = vmatpush.bf16.xpose.msra.mxu0 0
        %1095 = vmatpush.bf16.xpose.msra.mxu0 0
        %1096 = vmatpush.bf16.xpose.msra.mxu0 0
        %1097 = vmatpush.bf16.xpose.msra.mxu0 0
        %1098 = vmatpush.bf16.xpose.msra.mxu0 %v1089
        %1099 = vmatmul.bf16.gmra.mxu0 %v1086
        %v1100 = vpop.f32.mrf.mxu0
        %v1101 = vadd.f32 %v872, %v1100
        %v1102 = vpop.f32.mrf.mxu0
        %1103 = vdwg.mxu0
        %v1105 = vunpack.c.l.b16 %v1003
        %v1106 = vpack.c.b16 %v1105, %v1105
        %1107 = vrot.lane.b32.xlu0 %v1106, 96
        %v1108 = vpop.permute.xlu0 %1107
        %v1110 = vsel %vm1012, %v1003, 0
        %v1113 = vsel %vm1012, %v1108, 0
        %1115 = vmatpush.bf16.xpose.msra.mxu0 0
        %1116 = vmatpush.bf16.xpose.msra.mxu0 0
        %1117 = vmatpush.bf16.xpose.msra.mxu0 0
        %1118 = vmatpush.bf16.xpose.msra.mxu0 0
        %1119 = vmatpush.bf16.xpose.msra.mxu0 0
        %1120 = vmatpush.bf16.xpose.msra.mxu0 0
        %1121 = vmatpush.bf16.xpose.msra.mxu0 0
        %1122 = vmatpush.bf16.xpose.msra.mxu0 %v1113
        %1123 = vmatmul.bf16.gmra.mxu0 %v1110
        %v1124 = vpop.f32.mrf.mxu0
        %v1125 = vadd.f32 %v872, %v1124
        %v1126 = vpop.f32.mrf.mxu0
        %1127 = vdwg.mxu0
        %v1129 = vunpack.c.l.b16 %v1004
        %v1130 = vpack.c.b16 %v1129, %v1129
        %1131 = vrot.lane.b32.xlu0 %v1130, 96
        %v1132 = vpop.permute.xlu0 %1131
        %v1134 = vsel %vm1012, %v1004, 0
        %v1137 = vsel %vm1012, %v1132, 0
        %1139 = vmatpush.bf16.xpose.msra.mxu0 0
        %1140 = vmatpush.bf16.xpose.msra.mxu0 0
        %1141 = vmatpush.bf16.xpose.msra.mxu0 0
        %1142 = vmatpush.bf16.xpose.msra.mxu0 0
        %1143 = vmatpush.bf16.xpose.msra.mxu0 0
        %1144 = vmatpush.bf16.xpose.msra.mxu0 0
        %1145 = vmatpush.bf16.xpose.msra.mxu0 0
        %1146 = vmatpush.bf16.xpose.msra.mxu0 %v1137
        %1147 = vmatmul.bf16.gmra.mxu0 %v1134
        %v1148 = vpop.f32.mrf.mxu0
        %v1149 = vadd.f32 %v872, %v1148
        %v1150 = vpop.f32.mrf.mxu0
        %1151 = vdwg.mxu0
        %v1153 = vunpack.c.l.b16 %v1005
        %v1154 = vpack.c.b16 %v1153, %v1153
        %1155 = vrot.lane.b32.xlu0 %v1154, 96
        %v1156 = vpop.permute.xlu0 %1155
        %v1158 = vsel %vm1012, %v1005, 0
        %v1161 = vsel %vm1012, %v1156, 0
        %1163 = vmatpush.bf16.xpose.msra.mxu0 0
        %1164 = vmatpush.bf16.xpose.msra.mxu0 0
        %1165 = vmatpush.bf16.xpose.msra.mxu0 0
        %1166 = vmatpush.bf16.xpose.msra.mxu0 0
        %1167 = vmatpush.bf16.xpose.msra.mxu0 0
        %1168 = vmatpush.bf16.xpose.msra.mxu0 0
        %1169 = vmatpush.bf16.xpose.msra.mxu0 0
        %1170 = vmatpush.bf16.xpose.msra.mxu0 %v1161
        %1171 = vmatmul.bf16.gmra.mxu0 %v1158
        %v1172 = vpop.f32.mrf.mxu0
        %v1173 = vadd.f32 %v872, %v1172
        %v1174 = vpop.f32.mrf.mxu0
        %1175 = vdwg.mxu0
        %v1177 = vunpack.c.l.b16 %v1006
        %v1178 = vpack.c.b16 %v1177, %v1177
        %1179 = vrot.lane.b32.xlu0 %v1178, 96
        %v1180 = vpop.permute.xlu0 %1179
        %v1182 = vsel %vm1012, %v1006, 0
        %v1185 = vsel %vm1012, %v1180, 0
        %1187 = vmatpush.bf16.xpose.msra.mxu0 0
        %1188 = vmatpush.bf16.xpose.msra.mxu0 0
        %1189 = vmatpush.bf16.xpose.msra.mxu0 0
        %1190 = vmatpush.bf16.xpose.msra.mxu0 0
        %1191 = vmatpush.bf16.xpose.msra.mxu0 0
        %1192 = vmatpush.bf16.xpose.msra.mxu0 0
        %1193 = vmatpush.bf16.xpose.msra.mxu0 0
        %1194 = vmatpush.bf16.xpose.msra.mxu0 %v1185
        %1195 = vmatmul.bf16.gmra.mxu0 %v1182
        %v1196 = vpop.f32.mrf.mxu0
        %v1197 = vadd.f32 %v872, %v1196
        %v1198 = vpop.f32.mrf.mxu0
        %1199 = vdwg.mxu0
        %v1200 = vsel %vm1012, %v1029, -inf
        %1201 = vmax.xlane.f32.xlu0 %v1200
        %v1202 = vpop.xlane.xlu0 %1201
        %v1203 = vsel %vm1012, %v1053, -inf
        %1204 = vmax.xlane.f32.xlu0 %v1203
        %v1205 = vpop.xlane.xlu0 %1204
        %v1206 = vsel %vm1012, %v1077, -inf
        %1207 = vmax.xlane.f32.xlu0 %v1206
        %v1208 = vpop.xlane.xlu0 %1207
        %v1209 = vsel %vm1012, %v1101, -inf
        %1210 = vmax.xlane.f32.xlu0 %v1209
        %v1211 = vpop.xlane.xlu0 %1210
        %v1212 = vsel %vm1012, %v1125, -inf
        %1213 = vmax.xlane.f32.xlu0 %v1212
        %v1214 = vpop.xlane.xlu0 %1213
        %v1215 = vsel %vm1012, %v1149, -inf
        %1216 = vmax.xlane.f32.xlu0 %v1215
        %v1217 = vpop.xlane.xlu0 %1216
        %v1218 = vsel %vm1012, %v1173, -inf
        %1219 = vmax.xlane.f32.xlu0 %v1218
        %v1220 = vpop.xlane.xlu0 %1219
        %v1221 = vsel %vm1012, %v1197, -inf
        %1222 = vmax.xlane.f32.xlu0 %v1221
        %v1223 = vpop.xlane.xlu0 %1222
        %v1224 = vsub.f32 %v1029, %v1202
        %v1225 = vsub.f32 %v1053, %v1205
        %v1226 = vsub.f32 %v1077, %v1208
        %v1227 = vsub.f32 %v1101, %v1211
        %v1228 = vsub.f32 %v1125, %v1214
        %v1229 = vsub.f32 %v1149, %v1217
        %v1230 = vsub.f32 %v1173, %v1220
        %v1231 = vsub.f32 %v1197, %v1223
        %v1232 = vmul.f32 %v1224, 1.442695
        %v1233 = vpow.pop %v1232
        %v1234 = vmul.f32 %v1225, 1.442695
        %v1235 = vpow.pop %v1234
        %v1236 = vmul.f32 %v1226, 1.442695
        %v1237 = vpow.pop %v1236
        %v1238 = vmul.f32 %v1227, 1.442695
        %v1239 = vpow.pop %v1238
        %v1240 = vmul.f32 %v1228, 1.442695
        %v1241 = vpow.pop %v1240
        %v1242 = vmul.f32 %v1229, 1.442695
        %v1243 = vpow.pop %v1242
        %v1244 = vmul.f32 %v1230, 1.442695
        %v1245 = vpow.pop %v1244
        %v1246 = vmul.f32 %v1231, 1.442695
        %v1247 = vpow.pop %v1246
        %v1248 = vsel %vm1012, %v1233, 0.0
        %1249 = vadd.xlane.f32.xlu0 %v1248
        %v1250 = vpop.xlane.xlu0 %1249
        %v1251 = vsel %vm1012, %v1235, 0.0
        %1252 = vadd.xlane.f32.xlu0 %v1251
        %v1253 = vpop.xlane.xlu0 %1252
        %v1254 = vsel %vm1012, %v1237, 0.0
        %1255 = vadd.xlane.f32.xlu0 %v1254
        %v1256 = vpop.xlane.xlu0 %1255
        %v1257 = vsel %vm1012, %v1239, 0.0
        %1258 = vadd.xlane.f32.xlu0 %v1257
        %v1259 = vpop.xlane.xlu0 %1258
        %v1260 = vsel %vm1012, %v1241, 0.0
        %1261 = vadd.xlane.f32.xlu0 %v1260
        %v1262 = vpop.xlane.xlu0 %1261
        %v1263 = vsel %vm1012, %v1243, 0.0
        %1264 = vadd.xlane.f32.xlu0 %v1263
        %v1265 = vpop.xlane.xlu0 %1264
        %v1266 = vsel %vm1012, %v1245, 0.0
        %1267 = vadd.xlane.f32.xlu0 %v1266
        %v1268 = vpop.xlane.xlu0 %1267
        %v1269 = vsel %vm1012, %v1247, 0.0
        %1270 = vadd.xlane.f32.xlu0 %v1269
        %v1271 = vpop.xlane.xlu0 %1270
        %v1272 = vrcp.pop %v1250
        %v1273 = vrcp.pop %v1253
        %v1274 = vrcp.pop %v1256
        %v1275 = vrcp.pop %v1259
        %v1276 = vrcp.pop %v1262
        %v1277 = vrcp.pop %v1265
        %v1278 = vrcp.pop %v1268
        %v1279 = vrcp.pop %v1271
        %v1280 = vmul.f32 %v1233, %v1272
        %v1281 = vmul.f32 %v1235, %v1273
        %v1282 = vmul.f32 %v1237, %v1274
        %v1283 = vmul.f32 %v1239, %v1275
        %v1284 = vmul.f32 %v1241, %v1276
        %v1285 = vmul.f32 %v1243, %v1277
        %v1286 = vmul.f32 %v1245, %v1278
        %v1287 = vmul.f32 %v1247, %v1279
        %v1288 = vpack.c.bf16 %v1280, %v1280
        %v1289 = vpack.c.bf16 %v1281, %v1281
        %v1290 = vpack.c.bf16 %v1282, %v1282
        %v1291 = vpack.c.bf16 %v1283, %v1283
        %v1292 = vpack.c.bf16 %v1284, %v1284
        %v1293 = vpack.c.bf16 %v1285, %v1285
        %v1294 = vpack.c.bf16 %v1286, %v1286
        %v1295 = vpack.c.bf16 %v1287, %v1287
        %1296 = vrot.lane.b32.xlu0 %v1009, 64
        %v1297 = vpop.permute.xlu0 %1296
        %v1299 = vsel %vm1012, %v1288, 0
        %vm1301 = vcmask 1043456
        %v1303 = vsel %vm1301, %v1297, 0
        %1305 = vmatpush.bf16.msra.mxu0 0
        %1306 = vmatpush.bf16.msra.mxu0 0
        %1307 = vmatpush.bf16.msra.mxu0 0
        %1308 = vmatpush.bf16.msra.mxu0 0
        %1309 = vmatpush.bf16.msra.mxu0 0
        %1310 = vmatpush.bf16.msra.mxu0 0
        %1311 = vmatpush.bf16.msra.mxu0 0
        %1312 = vmatpush.bf16.msra.mxu0 %v1303
        %1313 = vmatmul.bf16.gmra.mxu0 %v1299
        %v1314 = vpop.f32.mrf.mxu0
        %v1315 = vadd.f32 0.0, %v1314
        %v1316 = vpop.f32.mrf.mxu0
        %1317 = vdwg.mxu0
        %1318 = vrot.lane.b32.xlu0 %v1034, 64
        %v1319 = vpop.permute.xlu0 %1318
        %v1321 = vsel %vm1012, %v1289, 0
        %v1324 = vsel %vm1301, %v1319, 0
        %1326 = vmatpush.bf16.msra.mxu0 0
        %1327 = vmatpush.bf16.msra.mxu0 0
        %1328 = vmatpush.bf16.msra.mxu0 0
        %1329 = vmatpush.bf16.msra.mxu0 0
        %1330 = vmatpush.bf16.msra.mxu0 0
        %1331 = vmatpush.bf16.msra.mxu0 0
        %1332 = vmatpush.bf16.msra.mxu0 0
        %1333 = vmatpush.bf16.msra.mxu0 %v1324
        %1334 = vmatmul.bf16.gmra.mxu0 %v1321
        %v1335 = vpop.f32.mrf.mxu0
        %v1336 = vadd.f32 0.0, %v1335
        %v1337 = vpop.f32.mrf.mxu0
        %1338 = vdwg.mxu0
        %1339 = vrot.lane.b32.xlu0 %v1058, 64
        %v1340 = vpop.permute.xlu0 %1339
        %v1342 = vsel %vm1012, %v1290, 0
        %v1345 = vsel %vm1301, %v1340, 0
        %1347 = vmatpush.bf16.msra.mxu0 0
        %1348 = vmatpush.bf16.msra.mxu0 0
        %1349 = vmatpush.bf16.msra.mxu0 0
        %1350 = vmatpush.bf16.msra.mxu0 0
        %1351 = vmatpush.bf16.msra.mxu0 0
        %1352 = vmatpush.bf16.msra.mxu0 0
        %1353 = vmatpush.bf16.msra.mxu0 0
        %1354 = vmatpush.bf16.msra.mxu0 %v1345
        %1355 = vmatmul.bf16.gmra.mxu0 %v1342
        %v1356 = vpop.f32.mrf.mxu0
        %v1357 = vadd.f32 0.0, %v1356
        %v1358 = vpop.f32.mrf.mxu0
        %1359 = vdwg.mxu0
        %1360 = vrot.lane.b32.xlu0 %v1082, 64
        %v1361 = vpop.permute.xlu0 %1360
        %v1363 = vsel %vm1012, %v1291, 0
        %v1366 = vsel %vm1301, %v1361, 0
        %1368 = vmatpush.bf16.msra.mxu0 0
        %1369 = vmatpush.bf16.msra.mxu0 0
        %1370 = vmatpush.bf16.msra.mxu0 0
        %1371 = vmatpush.bf16.msra.mxu0 0
        %1372 = vmatpush.bf16.msra.mxu0 0
        %1373 = vmatpush.bf16.msra.mxu0 0
        %1374 = vmatpush.bf16.msra.mxu0 0
        %1375 = vmatpush.bf16.msra.mxu0 %v1366
        %1376 = vmatmul.bf16.gmra.mxu0 %v1363
        %v1377 = vpop.f32.mrf.mxu0
        %v1378 = vadd.f32 0.0, %v1377
        %v1379 = vpop.f32.mrf.mxu0
        %1380 = vdwg.mxu0
        %1381 = vrot.lane.b32.xlu0 %v1106, 64
        %v1382 = vpop.permute.xlu0 %1381
        %v1384 = vsel %vm1012, %v1292, 0
        %v1387 = vsel %vm1301, %v1382, 0
        %1389 = vmatpush.bf16.msra.mxu0 0
        %1390 = vmatpush.bf16.msra.mxu0 0
        %1391 = vmatpush.bf16.msra.mxu0 0
        %1392 = vmatpush.bf16.msra.mxu0 0
        %1393 = vmatpush.bf16.msra.mxu0 0
        %1394 = vmatpush.bf16.msra.mxu0 0
        %1395 = vmatpush.bf16.msra.mxu0 0
        %1396 = vmatpush.bf16.msra.mxu0 %v1387
        %1397 = vmatmul.bf16.gmra.mxu0 %v1384
        %v1398 = vpop.f32.mrf.mxu0
        %v1399 = vadd.f32 0.0, %v1398
        %v1400 = vpop.f32.mrf.mxu0
        %1401 = vdwg.mxu0
        %1402 = vrot.lane.b32.xlu0 %v1130, 64
        %v1403 = vpop.permute.xlu0 %1402
        %v1405 = vsel %vm1012, %v1293, 0
        %v1408 = vsel %vm1301, %v1403, 0
        %1410 = vmatpush.bf16.msra.mxu0 0
        %1411 = vmatpush.bf16.msra.mxu0 0
        %1412 = vmatpush.bf16.msra.mxu0 0
        %1413 = vmatpush.bf16.msra.mxu0 0
        %1414 = vmatpush.bf16.msra.mxu0 0
        %1415 = vmatpush.bf16.msra.mxu0 0
        %1416 = vmatpush.bf16.msra.mxu0 0
        %1417 = vmatpush.bf16.msra.mxu0 %v1408
        %1418 = vmatmul.bf16.gmra.mxu0 %v1405
        %v1419 = vpop.f32.mrf.mxu0
        %v1420 = vadd.f32 0.0, %v1419
        %v1421 = vpop.f32.mrf.mxu0
        %1422 = vdwg.mxu0
        %1423 = vrot.lane.b32.xlu0 %v1154, 64
        %v1424 = vpop.permute.xlu0 %1423
        %v1426 = vsel %vm1012, %v1294, 0
        %v1429 = vsel %vm1301, %v1424, 0
        %1431 = vmatpush.bf16.msra.mxu0 0
        %1432 = vmatpush.bf16.msra.mxu0 0
        %1433 = vmatpush.bf16.msra.mxu0 0
        %1434 = vmatpush.bf16.msra.mxu0 0
        %1435 = vmatpush.bf16.msra.mxu0 0
        %1436 = vmatpush.bf16.msra.mxu0 0
        %1437 = vmatpush.bf16.msra.mxu0 0
        %1438 = vmatpush.bf16.msra.mxu0 %v1429
        %1439 = vmatmul.bf16.gmra.mxu0 %v1426
        %v1440 = vpop.f32.mrf.mxu0
        %v1441 = vadd.f32 0.0, %v1440
        %v1442 = vpop.f32.mrf.mxu0
        %1443 = vdwg.mxu0
        %1444 = vrot.lane.b32.xlu0 %v1178, 64
        %v1445 = vpop.permute.xlu0 %1444
        %v1447 = vsel %vm1012, %v1295, 0
        %v1450 = vsel %vm1301, %v1445, 0
        %1452 = vmatpush.bf16.msra.mxu0 0
        %1453 = vmatpush.bf16.msra.mxu0 0
        %1454 = vmatpush.bf16.msra.mxu0 0
        %1455 = vmatpush.bf16.msra.mxu0 0
        %1456 = vmatpush.bf16.msra.mxu0 0
        %1457 = vmatpush.bf16.msra.mxu0 0
        %1458 = vmatpush.bf16.msra.mxu0 0
        %1459 = vmatpush.bf16.msra.mxu0 %v1450
        %1460 = vmatmul.bf16.gmra.mxu0 %v1447
        %v1461 = vpop.f32.mrf.mxu0
        %v1462 = vadd.f32 0.0, %v1461
        %v1463 = vpop.f32.mrf.mxu0
        %1464 = vdwg.mxu0
        %1467 = vrot.lane.b32.xlu0 %v1357, 8
        %v1468 = vpop.permute.xlu0 %1467
        %1469 = vrot.lane.b32.xlu0 %v1378, 8
        %v1470 = vpop.permute.xlu0 %1469
        %1475 = vrot.lane.b32.xlu0 %v1399, 16
        %v1476 = vpop.permute.xlu0 %1475
        %1477 = vrot.lane.b32.xlu0 %v1420, 16
        %v1478 = vpop.permute.xlu0 %1477
        %1483 = vrot.lane.b32.xlu0 %v1441, 24
        %v1484 = vpop.permute.xlu0 %1483
        %1485 = vrot.lane.b32.xlu0 %v1462, 24
        %v1486 = vpop.permute.xlu0 %1485
        %v1489 = vsel %vm1012, %v1315, %v1468
        %v1490 = vsel %vm1012, %v1336, %v1470
        %vm1491 = vcmask 130048
        %v1492 = vsel %vm1491, %v1489, %v1476
        %v1493 = vsel %vm1491, %v1490, %v1478
        %vm1494 = vcmask 195584
        %v1495 = vsel %vm1494, %v1492, %v1484
        %v1496 = vsel %vm1494, %v1493, %v1486
        %v1497 = vpack.c.bf16 %v1496, %v1495
        %v1498 = vld [vmem:[%s769] sm:$0xf]
        %v1499 = vld [vmem:[%s769 + $0x4] sm:$0xf]
        %v1500 = vld [vmem:[%s769 + $0x8] sm:$0xf]
        %v1501 = vld [vmem:[%s769 + $0xc] sm:$0xf]
        %v1502 = vld [vmem:[%s772] sm:$0x1]
        %v1504 = vperm.slane %v1502, 0
        %v1510 = vunpack.c.l.b16 %v1498
        %v1511 = vunpack.c.l.b16 %v1499
        %v1512 = vunpack.c.l.b16 %v1500
        %v1513 = vunpack.c.l.b16 %v1501
        %v1514 = vpack.c.b16 %v1511, %v1510
        %v1515 = vpack.c.b16 %v1513, %v1512
        %v1519 = vsel %vm875, %v1497, 0
        %1521 = vmatpush.bf16.msra.mxu0 0
        %1522 = vmatpush.bf16.msra.mxu0 0
        %1523 = vmatpush.bf16.msra.mxu0 0
        %1524 = vmatpush.bf16.msra.mxu0 0
        %1525 = vmatpush.bf16.msra.mxu0 0
        %1526 = vmatpush.bf16.msra.mxu0 0
        %1527 = vmatpush.bf16.msra.mxu0 %v1515
        %1528 = vmatpush.bf16.msra.mxu0 %v1514
        %1529 = vmatmul.bf16.gmra.mxu0 %v1519
        %v1530 = vpop.f32.mrf.mxu0
        %v1531 = vadd.f32 %v1504, %v1530
        %v1532 = vpop.f32.mrf.mxu0
        %v1533 = vadd.f32 %v1504, %v1532
        %1534 = vdwg.mxu0
        %v1535 = vadd.f32 %v865, %v1531
        %v1536 = vadd.f32 %v866, %v1533
        %v1537 = vld [vmem:[%s775] sm:$0x1]
        %v1538 = vld [vmem:[%s778] sm:$0x1]
        %v1539 = vsel %vm875, %v1535, 0.0
        %1540 = vadd.xlane.f32.xlu0 %v1539
        %v1541 = vpop.xlane.xlu0 %1540
        %v1542 = vsel %vm875, %v1536, 0.0
        %1543 = vadd.xlane.f32.xlu0 %v1542
        %v1544 = vpop.xlane.xlu0 %1543
        %v1545 = vmul.f32 %v1541, %v888
        %v1546 = vmul.f32 %v1544, %v888
        %v1547 = vmul.f32 %v1535, %v1535
        %v1548 = vmul.f32 %v1536, %v1536
        %v1549 = vsel %vm875, %v1547, 0.0
        %1550 = vadd.xlane.f32.xlu0 %v1549
        %v1551 = vpop.xlane.xlu0 %1550
        %v1552 = vsel %vm875, %v1548, 0.0
        %1553 = vadd.xlane.f32.xlu0 %v1552
        %v1554 = vpop.xlane.xlu0 %1553
        %v1555 = vmul.f32 %v1551, %v888
        %v1556 = vmul.f32 %v1554, %v888
        %v1557 = vmul.f32 %v1545, %v1545
        %v1558 = vmul.f32 %v1546, %v1546
        %v1559 = vsub.f32 %v1555, %v1557
        %v1560 = vsub.f32 %v1556, %v1558
        %v1561 = vsub.f32 %v1535, %v1545
        %v1562 = vsub.f32 %v1536, %v1546
        %v1563 = vadd.f32 %v1559, 1e-05
        %v1564 = vadd.f32 %v1560, 1e-05
        %v1565 = vrsqrt.pop %v1563
        %v1566 = vmul.f32 %v1565, %v1563
        %v1567 = vmul.f32 %v1566, %v1565
        %v1568 = vmul.f32 0.5, %v1567
        %v1569 = vsub.f32 1.5, %v1568
        %v1570 = vmul.f32 %v1565, %v1569
        %vm1571 = vweird.f32 %v1563
        %vm1572 = vweird.f32 %v1565
        %vm1573 = vmor %vm1571, %vm1572
        %v1574 = vsel %vm1573, %v1565, %v1570
        %v1575 = vrsqrt.pop %v1564
        %v1576 = vmul.f32 %v1575, %v1564
        %v1577 = vmul.f32 %v1576, %v1575
        %v1578 = vmul.f32 0.5, %v1577
        %v1579 = vsub.f32 1.5, %v1578
        %v1580 = vmul.f32 %v1575, %v1579
        %vm1581 = vweird.f32 %v1564
        %vm1582 = vweird.f32 %v1575
        %vm1583 = vmor %vm1581, %vm1582
        %v1584 = vsel %vm1583, %v1575, %v1580
        %v1585 = vmul.f32 %v1561, %v1574
        %v1586 = vmul.f32 %v1562, %v1584
        %v1588 = vperm.slane %v1537, 0
        %v1590 = vmul.f32 %v1585, %v1588
        %v1591 = vmul.f32 %v1586, %v1588
        %v1593 = vperm.slane %v1538, 0
        %v1595 = vadd.f32 %v1590, %v1593
        %v1596 = vadd.f32 %v1591, %v1593
        %v1597 = vpack.c.bf16 %v1596, %v1595
        %v1598 = vld [vmem:[%s783] sm:$0xf]
        %v1599 = vld [vmem:[%s783 + $0x4] sm:$0xf]
        %v1600 = vld [vmem:[%s783 + $0x8] sm:$0xf]
        %v1601 = vld [vmem:[%s783 + $0xc] sm:$0xf]
        %v1602 = vld [vmem:[%s786] sm:$0x1]
        %v1604 = vperm.slane %v1602, 0
        %v1610 = vunpack.c.l.b16 %v1598
        %v1611 = vunpack.c.l.b16 %v1599
        %v1612 = vunpack.c.l.b16 %v1600
        %v1613 = vunpack.c.l.b16 %v1601
        %v1614 = vpack.c.b16 %v1611, %v1610
        %v1615 = vpack.c.b16 %v1613, %v1612
        %v1619 = vsel %vm875, %v1597, 0
        %1621 = vmatpush.bf16.msra.mxu0 0
        %1622 = vmatpush.bf16.msra.mxu0 0
        %1623 = vmatpush.bf16.msra.mxu0 0
        %1624 = vmatpush.bf16.msra.mxu0 0
        %1625 = vmatpush.bf16.msra.mxu0 0
        %1626 = vmatpush.bf16.msra.mxu0 0
        %1627 = vmatpush.bf16.msra.mxu0 %v1615
        %1628 = vmatpush.bf16.msra.mxu0 %v1614
        %1629 = vmatmul.bf16.gmra.mxu0 %v1619
        %v1630 = vpop.f32.mrf.mxu0
        %v1631 = vadd.f32 %v1604, %v1630
        %v1632 = vpop.f32.mrf.mxu0
        %v1633 = vadd.f32 %v1604, %v1632
        %1634 = vdwg.mxu0
        %v1635 = vmul.f32 %v1631, 1.702
        %v1636 = vmul.f32 %v1633, 1.702
        %v1637 = vxor.u32 %v1635, 2147483648
        %v1638 = vxor.u32 %v1636, 2147483648
        %v1639 = vmul.f32 %v1637, 1.442695
        %v1640 = vpow.pop %v1639
        %v1641 = vmul.f32 %v1638, 1.442695
        %v1642 = vpow.pop %v1641
        %v1643 = vadd.f32 %v1640, 1.0
        %v1644 = vadd.f32 %v1642, 1.0
        %v1645 = vrcp.pop %v1643
        %v1646 = vmul.f32 %v1643, %v1645
        %v1647 = vsub.f32 1.0, %v1646
        %v1648 = vmul.f32 %v1645, %v1647
        %v1649 = vadd.f32 %v1645, %v1648
        %vm1650 = vweird.f32 %v1643
        %vm1651 = vweird.f32 %v1645
        %vm1652 = vmor %vm1650, %vm1651
        %v1653 = vsel %vm1652, %v1645, %v1649
        %v1654 = vand.u32 2147483647, %v1643
        %vm1655 = vcmp.eq.f32.partialorder %v1654, 8.507059e+37
        %v1656 = vand.u32 %v1643, 2147483648
        %v1657 = vor.u32 1.1754944e-38, %v1656
        %v1658 = vsel %vm1655, %v1657, %v1653
        %v1659 = vmul.f32 1.0, %v1658
        %v1660 = vrcp.pop %v1644
        %v1661 = vmul.f32 %v1644, %v1660
        %v1662 = vsub.f32 1.0, %v1661
        %v1663 = vmul.f32 %v1660, %v1662
        %v1664 = vadd.f32 %v1660, %v1663
        %vm1665 = vweird.f32 %v1644
        %vm1666 = vweird.f32 %v1660
        %vm1667 = vmor %vm1665, %vm1666
        %v1668 = vsel %vm1667, %v1660, %v1664
        %v1669 = vand.u32 2147483647, %v1644
        %vm1670 = vcmp.eq.f32.partialorder %v1669, 8.507059e+37
        %v1671 = vand.u32 %v1644, 2147483648
        %v1672 = vor.u32 1.1754944e-38, %v1671
        %v1673 = vsel %vm1670, %v1672, %v1668
        %v1674 = vmul.f32 1.0, %v1673
        %v1675 = vmul.f32 %v1631, %v1659
        %v1676 = vmul.f32 %v1633, %v1674
        %v1677 = vpack.c.bf16 %v1676, %v1675
        %v1678 = vld [vmem:[%s791] sm:$0xf]
        %v1679 = vld [vmem:[%s791 + $0x4] sm:$0xf]
        %v1680 = vld [vmem:[%s791 + $0x8] sm:$0xf]
        %v1681 = vld [vmem:[%s791 + $0xc] sm:$0xf]
        %v1682 = vld [vmem:[%s791 + $0x10] sm:$0xf]
        %v1683 = vld [vmem:[%s791 + $0x14] sm:$0xf]
        %v1684 = vld [vmem:[%s791 + $0x18] sm:$0xf]
        %v1685 = vld [vmem:[%s791 + $0x1c] sm:$0xf]
        %v1686 = vld [vmem:[%s791 + $0x20] sm:$0xf]
        %v1687 = vld [vmem:[%s791 + $0x24] sm:$0xf]
        %v1688 = vld [vmem:[%s791 + $0x28] sm:$0xf]
        %v1689 = vld [vmem:[%s791 + $0x2c] sm:$0xf]
        %v1690 = vld [vmem:[%s791 + $0x30] sm:$0xf]
        %v1691 = vld [vmem:[%s791 + $0x34] sm:$0xf]
        %v1692 = vld [vmem:[%s791 + $0x38] sm:$0xf]
        %v1693 = vld [vmem:[%s791 + $0x3c] sm:$0xf]
        %v1694 = vld [vmem:[%s794] sm:$0x1]
        %v1696 = vperm.slane %v1694, 0
        %v1714 = vunpack.c.l.b16 %v1678
        %v1715 = vunpack.c.l.b16 %v1679
        %v1716 = vunpack.c.l.b16 %v1680
        %v1717 = vunpack.c.l.b16 %v1681
        %v1718 = vunpack.c.l.b16 %v1682
        %v1719 = vunpack.c.l.b16 %v1683
        %v1720 = vunpack.c.l.b16 %v1684
        %v1721 = vunpack.c.l.b16 %v1685
        %v1722 = vunpack.c.l.b16 %v1686
        %v1723 = vunpack.c.l.b16 %v1687
        %v1724 = vunpack.c.l.b16 %v1688
        %v1725 = vunpack.c.l.b16 %v1689
        %v1726 = vunpack.c.l.b16 %v1690
        %v1727 = vunpack.c.l.b16 %v1691
        %v1728 = vunpack.c.l.b16 %v1692
        %v1729 = vunpack.c.l.b16 %v1693
        %v1730 = vpack.c.b16 %v1715, %v1714
        %v1731 = vpack.c.b16 %v1717, %v1716
        %v1732 = vpack.c.b16 %v1719, %v1718
        %v1733 = vpack.c.b16 %v1721, %v1720
        %v1734 = vpack.c.b16 %v1723, %v1722
        %v1735 = vpack.c.b16 %v1725, %v1724
        %v1736 = vpack.c.b16 %v1727, %v1726
        %v1737 = vpack.c.b16 %v1729, %v1728
        %1746 = vmatpush.bf16.msra.mxu0 %v1737
        %1747 = vmatpush.bf16.msra.mxu0 %v1736
        %1748 = vmatpush.bf16.msra.mxu0 %v1735
        %1749 = vmatpush.bf16.msra.mxu0 %v1734
        %1750 = vmatpush.bf16.msra.mxu0 %v1733
        %1751 = vmatpush.bf16.msra.mxu0 %v1732
        %1752 = vmatpush.bf16.msra.mxu0 %v1731
        %1753 = vmatpush.bf16.msra.mxu0 %v1730
        %1754 = vmatmul.bf16.gmra.mxu0 %v1677
        %v1755 = vpop.f32.mrf.mxu0
        %v1756 = vadd.f32 %v1696, %v1755
        %v1757 = vpop.f32.mrf.mxu0
        %v1758 = vadd.f32 %v1696, %v1757
        %1759 = vdwg.mxu0
        %v1760 = vadd.f32 %v1535, %v1756
        %v1761 = vadd.f32 %v1536, %v1758
        %1762 = vst.msk [vmem:[#allocation2] sm:$0xff] %vm875, %v1760
        %1763 = vst.msk [vmem:[#allocation2 + $0x8] sm:$0xff] %vm875, %v1761
        %p1764 = scmp.eq.s32.totalorder %s39, 2
        // Predicated region
        $region101: #{tpu_custom_call.1} parent=91 // pred_check
          %p1765 = pneg %p1764
        $region102: #{tpu_custom_call.1} parent=91 // pred_check_branch
          %1767 = sbr.rel (%p1765) target = $region104
        $region103: #{tpu_custom_call.1} parent=91 // pred_region
          %v1768 = vld [vmem:[#allocation2] sm:$0xff]
          %v1769 = vld [vmem:[#allocation2 + $0x8] sm:$0xff]
          %v1770 = vld [vmem:[%s16] sm:$0x1]
          %v1771 = vld [vmem:[%s17] sm:$0x1]
          %v1772 = vsel %vm875, %v1768, 0.0
          %1773 = vadd.xlane.f32.xlu0 %v1772
          %v1774 = vpop.xlane.xlu0 %1773
          %v1775 = vsel %vm875, %v1769, 0.0
          %1776 = vadd.xlane.f32.xlu0 %v1775
          %v1777 = vpop.xlane.xlu0 %1776
          %v1778 = vmul.f32 %v1774, %v888
          %v1779 = vmul.f32 %v1777, %v888
          %v1780 = vmul.f32 %v1768, %v1768
          %v1781 = vmul.f32 %v1769, %v1769
          %v1782 = vsel %vm875, %v1780, 0.0
          %1783 = vadd.xlane.f32.xlu0 %v1782
          %v1784 = vpop.xlane.xlu0 %1783
          %v1785 = vsel %vm875, %v1781, 0.0
          %1786 = vadd.xlane.f32.xlu0 %v1785
          %v1787 = vpop.xlane.xlu0 %1786
          %v1788 = vmul.f32 %v1784, %v888
          %v1789 = vmul.f32 %v1787, %v888
          %v1790 = vmul.f32 %v1778, %v1778
          %v1791 = vmul.f32 %v1779, %v1779
          %v1792 = vsub.f32 %v1788, %v1790
          %v1793 = vsub.f32 %v1789, %v1791
          %v1794 = vsub.f32 %v1768, %v1778
          %v1795 = vsub.f32 %v1769, %v1779
          %v1796 = vadd.f32 %v1792, 1e-05
          %v1797 = vadd.f32 %v1793, 1e-05
          %v1798 = vrsqrt.pop %v1796
          %v1799 = vmul.f32 %v1798, %v1796
          %v1800 = vmul.f32 %v1799, %v1798
          %v1801 = vmul.f32 0.5, %v1800
          %v1802 = vsub.f32 1.5, %v1801
          %v1803 = vmul.f32 %v1798, %v1802
          %vm1804 = vweird.f32 %v1796
          %vm1805 = vweird.f32 %v1798
          %vm1806 = vmor %vm1804, %vm1805
          %v1807 = vsel %vm1806, %v1798, %v1803
          %v1808 = vrsqrt.pop %v1797
          %v1809 = vmul.f32 %v1808, %v1797
          %v1810 = vmul.f32 %v1809, %v1808
          %v1811 = vmul.f32 0.5, %v1810
          %v1812 = vsub.f32 1.5, %v1811
          %v1813 = vmul.f32 %v1808, %v1812
          %vm1814 = vweird.f32 %v1797
          %vm1815 = vweird.f32 %v1808
          %vm1816 = vmor %vm1814, %vm1815
          %v1817 = vsel %vm1816, %v1808, %v1813
          %v1818 = vmul.f32 %v1794, %v1807
          %v1819 = vmul.f32 %v1795, %v1817
          %v1821 = vperm.slane %v1770, 0
          %v1823 = vmul.f32 %v1818, %v1821
          %v1824 = vmul.f32 %v1819, %v1821
          %v1826 = vperm.slane %v1771, 0
          %v1828 = vadd.f32 %v1823, %v1826
          %v1829 = vadd.f32 %v1824, %v1826
          %vm1830 = vcmp.eq.s32.totalorder %v868, 0
          %s1831 = sld [smem:[#allocation4]]
          %v1832 = vstv %s1831
          %v1833 = vsel %vm1830, %v1832, 0
          %vm1834 = vcmp.eq.s32.totalorder %v868, 1
          %s1835 = sld [smem:[#allocation4 + $0x1]]
          %s1836 = sadd.s32 %s1835, 8
          %v1837 = vstv %s1836
          %v1838 = vsel %vm1834, %v1837, %v1833
          %vm1839 = vcmp.eq.s32.totalorder %v870, %v1838
          %v1840 = vsel %vm1839, 1, 0
          %v1841 = vcvt.s32.f32 %v1840
          %v1843 = vsel %vm1491, %v1841, 0
          %1845 = vmatpush.msra.mxu0 0.0
          %1846 = vmatpush.msra.mxu0 0.0
          %1847 = vmatpush.msra.mxu0 0.0
          %1848 = vmatpush.msra.mxu0 0.0
          %1849 = vmatpush.msra.mxu0 0.0
          %1850 = vmatpush.msra.mxu0 0.0
          %1851 = vmatpush.msra.mxu0 0.0
          %1852 = vmatpush.msra.mxu0 0.0
          %1853 = vmatpush.msra.mxu0 0.0
          %1854 = vmatpush.msra.mxu0 0.0
          %1855 = vmatpush.msra.mxu0 0.0
          %1856 = vmatpush.msra.mxu0 0.0
          %1857 = vmatpush.msra.mxu0 0.0
          %1858 = vmatpush.msra.mxu0 0.0
          %1859 = vmatpush.msra.mxu0 %v1829
          %1860 = vmatpush.msra.mxu0 %v1828
          %1861 = vmatmul.f32.gmra.mxu0 %v1843
          %v1862 = vpop.f32.mrf.mxu0
          %v1863 = vadd.f32 0.0, %v1862
          %1864 = vdwg.mxu0
          %v1865 = vpack.c.bf16 %v1863, %v1863
          %v1866 = vld [vmem:[%s18] sm:$0xf]
          %v1867 = vld [vmem:[%s18 + $0x4] sm:$0xf]
          %v1868 = vld [vmem:[%s18 + $0x8] sm:$0xf]
          %v1869 = vld [vmem:[%s18 + $0xc] sm:$0xf]
          %v1874 = vunpack.c.l.b16 %v1866
          %v1875 = vunpack.c.l.b16 %v1867
          %v1876 = vunpack.c.l.b16 %v1868
          %v1877 = vunpack.c.l.b16 %v1869
          %v1878 = vpack.c.b16 %v1875, %v1874
          %v1879 = vpack.c.b16 %v1877, %v1876
          %v1883 = vsel %vm875, %v1865, 0
          %1885 = vmatpush.bf16.msra.mxu0 0
          %1886 = vmatpush.bf16.msra.mxu0 0
          %1887 = vmatpush.bf16.msra.mxu0 0
          %1888 = vmatpush.bf16.msra.mxu0 0
          %1889 = vmatpush.bf16.msra.mxu0 0
          %1890 = vmatpush.bf16.msra.mxu0 0
          %1891 = vmatpush.bf16.msra.mxu0 %v1879
          %1892 = vmatpush.bf16.msra.mxu0 %v1878
          %1893 = vmatmul.bf16.gmra.mxu0 %v1883
          %v1894 = vpop.f32.mrf.mxu0
          %v1895 = vadd.f32 0.0, %v1894
          %v1896 = vpop.f32.mrf.mxu0
          %1897 = vdwg.mxu0
          %vm1898 = vcmask 254976
          %1899 = vst.msk [vmem:[#allocation5] sm:$0x3] %vm1898, %v1895
        $region104: #{tpu_custom_call.1} parent=91 // pred_fallthru
          _
        // Predicated region
        $region105: #{tpu_custom_call.1} parent=91 // pred_check
          %p1900 = pneg %p505
        $region106: #{tpu_custom_call.1} parent=91 // pred_check_branch
          %1902 = sbr.rel (%p1900) target = $region108
        $region107: #{tpu_custom_call.1} parent=91 // pred_region
          %1904 = vsyncadd [#allocation6], 0
          %s1906 = sshll.u32 [#allocation5], 4
          %s1907 = int_to_ptr.vmem [resolvable:$true] %s1906
          %s1908 = sshll.u32 %s19, 4
          %s1909 = int_to_ptr.hbm [resolvable:$true] %s1908
          %1911 = dma.vmem_to_hbm [thread:$0]  %s1907, 32, %s1909, [#allocation6]
        $region108: #{tpu_custom_call.1} parent=91 // pred_fallthru
          _
        // Predicated region
        $region109: #{tpu_custom_call.1} parent=91 // pred_check
          %p1912 = pneg %p505
        $region110: #{tpu_custom_call.1} parent=91 // pred_check_branch
          %1914 = sbr.rel (%p1912) target = $region112
        $region111: #{tpu_custom_call.1} parent=91 // pred_region
          %1916 = dma.done [#allocation6], 32
        $region112: #{tpu_custom_call.1} parent=91 // pred_fallthru
          _
      $region92: #{tpu_custom_call.1} parent=5 // pred_fallthru
        _
      %p1917 = scmp.le.s32.totalorder 2, %s34
      // Predicated region
      $region113: #{tpu_custom_call.1} parent=5 // pred_check
        %p1918 = pneg %p1917
      $region114: #{tpu_custom_call.1} parent=5 // pred_check_branch
        %1920 = sbr.rel (%p1918) target = $region116
      $region115: #{tpu_custom_call.1} parent=5 // pred_region
        %s1921 = ssub.s32 %s34, 2
      $region116: #{tpu_custom_call.1} parent=5 // pred_fallthru
        _
    $region6: #{tpu_custom_call.1} parent=1 // loop_footer
      %s38 = sadd.s32 1, %s34
    $region7: #{tpu_custom_call.1} parent=1 // loop_footer_branch
      %33 = sbr.rel target = $region3
    $region8: #{tpu_custom_call.1} parent=1 // loop_exit
      _
    %1922 = vsyncpa [#allocation6], 1
    %s1923 = scalar_lea.sflag [#allocation6], 1
    %1924 = vsyncpa %s1923, 1

</llo_original>
